<compile_context>
chip_gen: v7x
topology: tpu7x:2x2x1
jax: 0.10.0
libtpu: 0.0.40
codegen_flags: <defaults>
</compile_context>

<pallas_src>
import jax
import jax.numpy as jnp
from jax.experimental import pallas as pl
from jax.experimental.pallas import tpu as pltpu

# ---------------- model hyper-parameters (small synthetic config) -----------
NUM_USERS = 64
NUM_ITEMS = 96
EMBED_DIM = 32
SVD_Q = 8
NUM_LAYERS = 2
BATCH = 16
TEMPERATURE = 0.2
REG_LAMBDA = 1e-4
SSL_LAMBDA = 0.1

_VMEM = pl.BlockSpec(memory_space=pltpu.MemorySpace.VMEM)


# ---------------------------- fused Pallas kernel ----------------------------
def lightgcl_kernel(r_ref, rt_ref, ghat_u_ref, ghat_i_ref,
                    eu0_ref, ei0_ref, idx_ref, out_ref):
    """aggregate() + batch gathers + all three losses, fully fused.

    out_ref is a lane-dense (1, 128) row: [bpr, reg, ssl, 0, 0, ...].
    """
    f32 = jnp.float32
    bf16 = jnp.bfloat16

    R = r_ref[...]          # (U, I)  bf16
    Rt = rt_ref[...]        # (I, U)  bf16
    Gu = ghat_u_ref[...]    # (U, I)  bf16  = u_mul_s @ v_T
    Gi = ghat_i_ref[...]    # (I, U)  bf16  = v_mul_s @ u_T
    e_u0 = eu0_ref[...]     # (U, D)  f32
    e_i0 = ei0_ref[...]     # (I, D)  f32

    # ---- aggregate(): layer propagation + SVD branch, summed over layers ----
    # Per the reference, layer-0 contributions (incl. the G branch) are the ego
    # embeddings themselves.
    e_u, e_i = e_u0, e_i0
    acc_u, acc_i = e_u0, e_i0
    acc_gu, acc_gi = e_u0, e_i0
    for _ in range(NUM_LAYERS):
        e_u_b = e_u.astype(bf16)
        e_i_b = e_i.astype(bf16)
        z_u = jnp.dot(R, e_i_b, preferred_element_type=f32)     # (U, D)
        z_i = jnp.dot(Rt, e_u_b, preferred_element_type=f32)    # (I, D)
        g_u = jnp.dot(Gu, e_i_b, preferred_element_type=f32)    # (U, D)
        g_i = jnp.dot(Gi, e_u_b, preferred_element_type=f32)    # (I, D)
        e_u, e_i = z_u, z_i
        acc_u = acc_u + z_u
        acc_i = acc_i + z_i
        acc_gu = acc_gu + g_u
        acc_gi = acc_gi + g_i

    # ---- batch gathers: 2 consolidated one-hot MXU matmuls ----
    idx = idx_ref[...]                                   # (3B, 1) [user;pos;neg]
    u_idx = idx[0:BATCH, :]                              # (B, 1)
    pn_idx = idx[BATCH:3 * BATCH, :]                     # (2B, 1) pos then neg
    iota_u = jax.lax.broadcasted_iota(jnp.int32, (BATCH, NUM_USERS), 1)
    iota_i = jax.lax.broadcasted_iota(jnp.int32, (2 * BATCH, NUM_ITEMS), 1)
    oh_u = (u_idx == iota_u).astype(f32)                 # (B, U)
    oh_pn = (pn_idx == iota_i).astype(f32)               # (2B, I)

    rhs_u = jnp.concatenate([acc_u, e_u0, acc_gu], axis=1)   # (U, 3D)
    rhs_i = jnp.concatenate([acc_i, e_i0, acc_gi], axis=1)   # (I, 3D)
    gath_u = jnp.dot(oh_u, rhs_u, preferred_element_type=f32)    # (B, 3D)
    gath_pn = jnp.dot(oh_pn, rhs_i, preferred_element_type=f32)  # (2B, 3D)

    D = EMBED_DIM
    ue = gath_u[:, 0:D]                       # all_user_emb[user]
    ego_u = gath_u[:, D:2 * D]                # ego user emb
    gu_b = gath_u[:, 2 * D:3 * D]             # g_user_emb[user]
    pe = gath_pn[0:BATCH, 0:D]                # all_item_emb[pos]
    ego_p = gath_pn[0:BATCH, D:2 * D]         # ego pos emb
    gi_b = gath_pn[0:BATCH, 2 * D:3 * D]      # g_item_emb[pos]
    ne = gath_pn[BATCH:2 * BATCH, 0:D]        # all_item_emb[neg]
    ego_n = gath_pn[BATCH:2 * BATCH, D:2 * D]  # ego neg emb

    # ---- BPR loss: mean softplus(neg - pos), numerically stable ----
    pos_scores = jnp.sum(ue * pe, axis=1, keepdims=True)                 # (B,1)
    neg_scores = jnp.sum(ue * ne, axis=1, keepdims=True)                 # (B,1)
    x = neg_scores - pos_scores
    softplus = jnp.maximum(x, 0.0) + jnp.log(1.0 + jnp.exp(-jnp.abs(x)))
    bpr = jnp.mean(softplus, axis=0, keepdims=True)                      # (1,1)

    # ---- reg loss (on ego embeddings) ----
    sq = (jnp.sum(jnp.sum(ego_u * ego_u, axis=1, keepdims=True), axis=0, keepdims=True)
          + jnp.sum(jnp.sum(ego_p * ego_p, axis=1, keepdims=True), axis=0, keepdims=True)
          + jnp.sum(jnp.sum(ego_n * ego_n, axis=1, keepdims=True), axis=0, keepdims=True))
    reg = (REG_LAMBDA * 0.5 / float(BATCH)) * sq                         # (1,1)

    # ---- SSL (contrastive) loss ----
    # Fold 1/temperature once into the small (B,D) g-embeddings; it distributes
    # through both the logits contraction and the positive dot-products.
    inv_temp = 1.0 / TEMPERATURE
    gu_s = gu_b * inv_temp
    gi_s = gi_b * inv_temp
    # logits^T = all_emb @ g_batch^T -> only the small (B,D) operand is
    # transposed; the (U,D)/(I,D) tables stay in their natural layout.
    logits_uT = jnp.dot(acc_u, gu_s.T, preferred_element_type=f32)       # (U,B)
    logits_iT = jnp.dot(acc_i, gi_s.T, preferred_element_type=f32)       # (I,B)
    # Max-shifted logsumexp over the user/item axis (eps inside the shift;
    # negligible vs. the reference's log(sum(exp)+1e-8)).
    m_u = jnp.max(logits_uT, axis=0, keepdims=True)                      # (1,B)
    m_i = jnp.max(logits_iT, axis=0, keepdims=True)
    neg_u = m_u + jnp.log(jnp.sum(jnp.exp(logits_uT - m_u), axis=0, keepdims=True) + 1e-8)
    neg_i = m_i + jnp.log(jnp.sum(jnp.exp(logits_iT - m_i), axis=0, keepdims=True) + 1e-8)
    neg_score = (jnp.mean(neg_u, axis=1, keepdims=True)
                 + jnp.mean(neg_i, axis=1, keepdims=True))               # (1,1)
    pos_u = jnp.clip(jnp.sum(ue * gu_s, axis=1, keepdims=True), -5.0, 5.0)
    pos_i = jnp.clip(jnp.sum(pe * gi_s, axis=1, keepdims=True), -5.0, 5.0)
    pos_score = (jnp.mean(pos_u, axis=0, keepdims=True)
                 + jnp.mean(pos_i, axis=0, keepdims=True))               # (1,1)
    ssl = SSL_LAMBDA * (neg_score - pos_score)                           # (1,1)

    # ---- pack the three scalars into one lane-dense (1,128) row ----
    lane = jax.lax.broadcasted_iota(jnp.int32, (1, 128), 1)
    row = jnp.where(lane == 0, bpr,
                    jnp.where(lane == 1, reg,
                              jnp.where(lane == 2, ssl, 0.0)))
    out_ref[...] = row


# ------------------------------- wrapper --------------------------------------
def lightgcl_forward(E_u0, E_i0, R_bf, Rt_bf, Ghat_u_bf, Ghat_i_bf,
                     user, positive, negative):
    # Merge the three index vectors into one (3B,1) int32 input (single DMA).
    idx = jnp.concatenate([user, positive, negative]).reshape(3 * BATCH, 1)
    idx = idx.astype(jnp.int32)
    out = pl.pallas_call(
        lightgcl_kernel,
        out_shape=jax.ShapeDtypeStruct((1, 128), jnp.float32),
        in_specs=[_VMEM] * 7,
        out_specs=_VMEM,
    )(R_bf, Rt_bf, Ghat_u_bf, Ghat_i_bf, E_u0, E_i0, idx)
    return [out[0, 0], out[0, 1], out[0, 2]]


# ---------------------------- parameter setup --------------------------------
def build_graph(key):
    """Dense stand-in for the normalized bipartite adjacency R."""
    a = (jax.random.uniform(key, (NUM_USERS, NUM_ITEMS)) < 0.15).astype(jnp.float32)
    d_u = jnp.sum(a, axis=1, keepdims=True)
    d_i = jnp.sum(a, axis=0, keepdims=True)
    inv_u = jnp.where(d_u > 0, 1.0 / jnp.sqrt(d_u), 0.0)
    inv_i = jnp.where(d_i > 0, 1.0 / jnp.sqrt(d_i), 0.0)
    return a * inv_u * inv_i


def svd_setup(R, q):
    """Mirrors torch.svd_lowrank(Graph, q) in __init__, but precomputes the
    step-invariant low-rank products Ghat_u = u_mul_s @ v_T (U,I) and
    Ghat_i = v_mul_s @ u_T (I,U) once (parameter setup glue)."""
    U_, S, Vh = jnp.linalg.svd(R, full_matrices=False)
    svd_u = U_[:, :q]             # (U, q)
    s = S[:q]                     # (q,)
    svd_v = Vh[:q, :].T           # (I, q)
    ghat_u = (svd_u * s[None, :]) @ svd_v.T   # u_mul_s @ v_T  -> (U, I)
    ghat_i = (svd_v * s[None, :]) @ svd_u.T   # v_mul_s @ u_T  -> (I, U)
    return ghat_u, ghat_i


def xavier_uniform(key, shape):
    fan_out, fan_in = shape
    bound = (6.0 / (fan_in + fan_out)) ** 0.5
    return jax.random.uniform(key, shape, minval=-bound, maxval=bound,
                              dtype=jnp.float32)


# --------------------------------- main ---------------------------------------
if __name__ == "__main__":
    key = jax.random.PRNGKey(0)
    k_eu, k_ei, k_g, k_u, k_p, k_n = jax.random.split(key, 6)

    E_u0 = xavier_uniform(k_eu, (NUM_USERS, EMBED_DIM))
    E_i0 = xavier_uniform(k_ei, (NUM_ITEMS, EMBED_DIM))
    R = build_graph(k_g)
    Ghat_u, Ghat_i = svd_setup(R, SVD_Q)

    # One-time bf16 casts for the MXU-only graph operands (halves DMA bytes;
    # accumulation and loss math stay f32 in-kernel).
    R_bf = R.astype(jnp.bfloat16)
    Rt_bf = R.T.astype(jnp.bfloat16)
    Ghat_u_bf = Ghat_u.astype(jnp.bfloat16)
    Ghat_i_bf = Ghat_i.astype(jnp.bfloat16)

    user = jax.random.randint(k_u, (BATCH,), 0, NUM_USERS, dtype=jnp.int32)
    positive = jax.random.randint(k_p, (BATCH,), 0, NUM_ITEMS, dtype=jnp.int32)
    negative = jax.random.randint(k_n, (BATCH,), 0, NUM_ITEMS, dtype=jnp.int32)

    loss_list = lightgcl_forward(E_u0, E_i0, R_bf, Rt_bf, Ghat_u_bf, Ghat_i_bf,
                                 user, positive, negative)
    loss_list = [jax.block_until_ready(l) for l in loss_list]
    assert all(bool(jnp.isfinite(l)) for l in loss_list)
    print("KERNEL_OK")
</pallas_src>

<mosaic_0001>
module attributes {stable_mosaic.version = 11 : i64} {
  func.func @lightgcl_kernel(%arg0: memref<64x96xbf16, #tpu.memory_space<vmem>>, %arg1: memref<96x64xbf16, #tpu.memory_space<vmem>>, %arg2: memref<64x96xbf16, #tpu.memory_space<vmem>>, %arg3: memref<96x64xbf16, #tpu.memory_space<vmem>>, %arg4: memref<64x32xf32, #tpu.memory_space<vmem>>, %arg5: memref<96x32xf32, #tpu.memory_space<vmem>>, %arg6: memref<48x1xi32, #tpu.memory_space<vmem>>, %arg7: memref<1x128xf32, #tpu.memory_space<vmem>>) attributes {dimension_semantics = [], scalar_prefetch = 0 : i64, scratch_operands = 0 : i64, tpu.core_type = #tpu.core_type<tc>} {
    %c0 = arith.constant 0 : index
    %c0_0 = arith.constant 0 : index
    %0 = vector.load %arg0[%c0, %c0_0] : memref<64x96xbf16, #tpu.memory_space<vmem>>, vector<64x96xbf16>
    %c0_1 = arith.constant 0 : index
    %c0_2 = arith.constant 0 : index
    %1 = vector.load %arg1[%c0_1, %c0_2] : memref<96x64xbf16, #tpu.memory_space<vmem>>, vector<96x64xbf16>
    %c0_3 = arith.constant 0 : index
    %c0_4 = arith.constant 0 : index
    %2 = vector.load %arg2[%c0_3, %c0_4] : memref<64x96xbf16, #tpu.memory_space<vmem>>, vector<64x96xbf16>
    %c0_5 = arith.constant 0 : index
    %c0_6 = arith.constant 0 : index
    %3 = vector.load %arg3[%c0_5, %c0_6] : memref<96x64xbf16, #tpu.memory_space<vmem>>, vector<96x64xbf16>
    %c0_7 = arith.constant 0 : index
    %c0_8 = arith.constant 0 : index
    %4 = vector.load %arg4[%c0_7, %c0_8] : memref<64x32xf32, #tpu.memory_space<vmem>>, vector<64x32xf32>
    %c0_9 = arith.constant 0 : index
    %c0_10 = arith.constant 0 : index
    %5 = vector.load %arg5[%c0_9, %c0_10] : memref<96x32xf32, #tpu.memory_space<vmem>>, vector<96x32xf32>
    %6 = arith.truncf %4 : vector<64x32xf32> to vector<64x32xbf16>
    %7 = arith.truncf %5 : vector<96x32xf32> to vector<96x32xbf16>
    %cst = arith.constant dense<0.000000e+00> : vector<64x32xf32>
    %8 = tpu.matmul %0, %7, %cst {dimension_numbers = #tpu.dot_dimension_numbers<[1], [0], [0], [1], [0, 0, 1, 1], [], []>} : vector<64x96xbf16>, vector<96x32xbf16>, vector<64x32xf32> -> vector<64x32xf32>
    %cst_11 = arith.constant dense<0.000000e+00> : vector<96x32xf32>
    %9 = tpu.matmul %1, %6, %cst_11 {dimension_numbers = #tpu.dot_dimension_numbers<[1], [0], [0], [1], [0, 0, 1, 1], [], []>} : vector<96x64xbf16>, vector<64x32xbf16>, vector<96x32xf32> -> vector<96x32xf32>
    %cst_12 = arith.constant dense<0.000000e+00> : vector<64x32xf32>
    %10 = tpu.matmul %2, %7, %cst_12 {dimension_numbers = #tpu.dot_dimension_numbers<[1], [0], [0], [1], [0, 0, 1, 1], [], []>} : vector<64x96xbf16>, vector<96x32xbf16>, vector<64x32xf32> -> vector<64x32xf32>
    %cst_13 = arith.constant dense<0.000000e+00> : vector<96x32xf32>
    %11 = tpu.matmul %3, %6, %cst_13 {dimension_numbers = #tpu.dot_dimension_numbers<[1], [0], [0], [1], [0, 0, 1, 1], [], []>} : vector<96x64xbf16>, vector<64x32xbf16>, vector<96x32xf32> -> vector<96x32xf32>
    %12 = arith.addf %4, %8 : vector<64x32xf32>
    %13 = arith.addf %5, %9 : vector<96x32xf32>
    %14 = arith.addf %4, %10 : vector<64x32xf32>
    %15 = arith.addf %5, %11 : vector<96x32xf32>
    %16 = arith.truncf %8 : vector<64x32xf32> to vector<64x32xbf16>
    %17 = arith.truncf %9 : vector<96x32xf32> to vector<96x32xbf16>
    %cst_14 = arith.constant dense<0.000000e+00> : vector<64x32xf32>
    %18 = tpu.matmul %0, %17, %cst_14 {dimension_numbers = #tpu.dot_dimension_numbers<[1], [0], [0], [1], [0, 0, 1, 1], [], []>} : vector<64x96xbf16>, vector<96x32xbf16>, vector<64x32xf32> -> vector<64x32xf32>
    %cst_15 = arith.constant dense<0.000000e+00> : vector<96x32xf32>
    %19 = tpu.matmul %1, %16, %cst_15 {dimension_numbers = #tpu.dot_dimension_numbers<[1], [0], [0], [1], [0, 0, 1, 1], [], []>} : vector<96x64xbf16>, vector<64x32xbf16>, vector<96x32xf32> -> vector<96x32xf32>
    %cst_16 = arith.constant dense<0.000000e+00> : vector<64x32xf32>
    %20 = tpu.matmul %2, %17, %cst_16 {dimension_numbers = #tpu.dot_dimension_numbers<[1], [0], [0], [1], [0, 0, 1, 1], [], []>} : vector<64x96xbf16>, vector<96x32xbf16>, vector<64x32xf32> -> vector<64x32xf32>
    %cst_17 = arith.constant dense<0.000000e+00> : vector<96x32xf32>
    %21 = tpu.matmul %3, %16, %cst_17 {dimension_numbers = #tpu.dot_dimension_numbers<[1], [0], [0], [1], [0, 0, 1, 1], [], []>} : vector<96x64xbf16>, vector<64x32xbf16>, vector<96x32xf32> -> vector<96x32xf32>
    %22 = arith.addf %12, %18 : vector<64x32xf32>
    %23 = arith.addf %13, %19 : vector<96x32xf32>
    %24 = arith.addf %14, %20 : vector<64x32xf32>
    %25 = arith.addf %15, %21 : vector<96x32xf32>
    %c0_18 = arith.constant 0 : index
    %c0_19 = arith.constant 0 : index
    %26 = vector.load %arg6[%c0_18, %c0_19] : memref<48x1xi32, #tpu.memory_space<vmem>>, vector<48x1xi32>
    %27 = vector.extract_strided_slice %26 {offsets = [0, 0], sizes = [16, 1], strides = [1, 1]} : vector<48x1xi32> to vector<16x1xi32>
    %28 = vector.extract_strided_slice %26 {offsets = [16, 0], sizes = [32, 1], strides = [1, 1]} : vector<48x1xi32> to vector<32x1xi32>
    %29 = tpu.iota {dimensions = array<i32: 1>} : vector<16x64xi32>
    %30 = tpu.iota {dimensions = array<i32: 1>} : vector<32x96xi32>
    %31 = vector.broadcast %27 : vector<16x1xi32> to vector<16x64xi32>
    %32 = arith.cmpi eq, %31, %29 : vector<16x64xi32>
    %33 = arith.extui %32 : vector<16x64xi1> to vector<16x64xi32>
    %34 = arith.sitofp %33 : vector<16x64xi32> to vector<16x64xf32>
    %35 = vector.broadcast %28 : vector<32x1xi32> to vector<32x96xi32>
    %36 = arith.cmpi eq, %35, %30 : vector<32x96xi32>
    %37 = arith.extui %36 : vector<32x96xi1> to vector<32x96xi32>
    %38 = arith.sitofp %37 : vector<32x96xi32> to vector<32x96xf32>
    %39 = tpu.concatenate %22, %4, %24 in 1 : vector<64x32xf32>, vector<64x32xf32>, vector<64x32xf32> -> vector<64x96xf32>
    %40 = tpu.concatenate %23, %5, %25 in 1 : vector<96x32xf32>, vector<96x32xf32>, vector<96x32xf32> -> vector<96x96xf32>
    %cst_20 = arith.constant dense<0.000000e+00> : vector<16x96xf32>
    %41 = tpu.matmul %34, %39, %cst_20 {dimension_numbers = #tpu.dot_dimension_numbers<[1], [0], [0], [1], [0, 0, 1, 1], [], []>} : vector<16x64xf32>, vector<64x96xf32>, vector<16x96xf32> -> vector<16x96xf32>
    %cst_21 = arith.constant dense<0.000000e+00> : vector<32x96xf32>
    %42 = tpu.matmul %38, %40, %cst_21 {dimension_numbers = #tpu.dot_dimension_numbers<[1], [0], [0], [1], [0, 0, 1, 1], [], []>} : vector<32x96xf32>, vector<96x96xf32>, vector<32x96xf32> -> vector<32x96xf32>
    %43 = vector.extract_strided_slice %41 {offsets = [0, 0], sizes = [16, 32], strides = [1, 1]} : vector<16x96xf32> to vector<16x32xf32>
    %44 = vector.extract_strided_slice %41 {offsets = [0, 32], sizes = [16, 32], strides = [1, 1]} : vector<16x96xf32> to vector<16x32xf32>
    %45 = vector.extract_strided_slice %41 {offsets = [0, 64], sizes = [16, 32], strides = [1, 1]} : vector<16x96xf32> to vector<16x32xf32>
    %46 = vector.extract_strided_slice %42 {offsets = [0, 0], sizes = [16, 32], strides = [1, 1]} : vector<32x96xf32> to vector<16x32xf32>
    %47 = vector.extract_strided_slice %42 {offsets = [0, 32], sizes = [16, 32], strides = [1, 1]} : vector<32x96xf32> to vector<16x32xf32>
    %48 = vector.extract_strided_slice %42 {offsets = [0, 64], sizes = [16, 32], strides = [1, 1]} : vector<32x96xf32> to vector<16x32xf32>
    %49 = vector.extract_strided_slice %42 {offsets = [16, 0], sizes = [16, 32], strides = [1, 1]} : vector<32x96xf32> to vector<16x32xf32>
    %50 = vector.extract_strided_slice %42 {offsets = [16, 32], sizes = [16, 32], strides = [1, 1]} : vector<32x96xf32> to vector<16x32xf32>
    %51 = arith.mulf %43, %46 : vector<16x32xf32>
    %cst_22 = arith.constant dense<0.000000e+00> : vector<16xf32>
    %52 = vector.multi_reduction <add>, %51, %cst_22 [1] : vector<16x32xf32> to vector<16xf32>
    %53 = vector.shape_cast %52 : vector<16xf32> to vector<16x1xf32>
    %54 = arith.mulf %43, %49 : vector<16x32xf32>
    %cst_23 = arith.constant dense<0.000000e+00> : vector<16xf32>
    %55 = vector.multi_reduction <add>, %54, %cst_23 [1] : vector<16x32xf32> to vector<16xf32>
    %56 = vector.shape_cast %55 : vector<16xf32> to vector<16x1xf32>
    %57 = arith.subf %56, %53 : vector<16x1xf32>
    %cst_24 = arith.constant 0.000000e+00 : f32
    %58 = vector.broadcast %cst_24 : f32 to vector<16x1xf32>
    %59 = arith.maximumf %57, %58 : vector<16x1xf32>
    %60 = math.absf %57 : vector<16x1xf32>
    %cst_25 = arith.constant 0.000000e+00 : f32
    %61 = vector.broadcast %cst_25 : f32 to vector<16x1xf32>
    %62 = arith.subf %61, %60 : vector<16x1xf32>
    %63 = math.exp %62 : vector<16x1xf32>
    %cst_26 = arith.constant 1.000000e+00 : f32
    %64 = vector.broadcast %cst_26 : f32 to vector<16x1xf32>
    %65 = arith.addf %64, %63 : vector<16x1xf32>
    %66 = math.log %65 : vector<16x1xf32>
    %67 = arith.addf %59, %66 : vector<16x1xf32>
    %cst_27 = arith.constant dense<0.000000e+00> : vector<1xf32>
    %68 = vector.multi_reduction <add>, %67, %cst_27 [0] : vector<16x1xf32> to vector<1xf32>
    %69 = vector.shape_cast %68 : vector<1xf32> to vector<1x1xf32>
    %cst_28 = arith.constant 1.600000e+01 : f32
    %70 = vector.broadcast %cst_28 : f32 to vector<1x1xf32>
    %71 = arith.divf %69, %70 : vector<1x1xf32>
    %72 = arith.mulf %44, %44 : vector<16x32xf32>
    %cst_29 = arith.constant dense<0.000000e+00> : vector<16xf32>
    %73 = vector.multi_reduction <add>, %72, %cst_29 [1] : vector<16x32xf32> to vector<16xf32>
    %74 = vector.shape_cast %73 : vector<16xf32> to vector<16x1xf32>
    %cst_30 = arith.constant dense<0.000000e+00> : vector<1xf32>
    %75 = vector.multi_reduction <add>, %74, %cst_30 [0] : vector<16x1xf32> to vector<1xf32>
    %76 = vector.shape_cast %75 : vector<1xf32> to vector<1x1xf32>
    %77 = arith.mulf %47, %47 : vector<16x32xf32>
    %cst_31 = arith.constant dense<0.000000e+00> : vector<16xf32>
    %78 = vector.multi_reduction <add>, %77, %cst_31 [1] : vector<16x32xf32> to vector<16xf32>
    %79 = vector.shape_cast %78 : vector<16xf32> to vector<16x1xf32>
    %cst_32 = arith.constant dense<0.000000e+00> : vector<1xf32>
    %80 = vector.multi_reduction <add>, %79, %cst_32 [0] : vector<16x1xf32> to vector<1xf32>
    %81 = vector.shape_cast %80 : vector<1xf32> to vector<1x1xf32>
    %82 = arith.addf %76, %81 : vector<1x1xf32>
    %83 = arith.mulf %50, %50 : vector<16x32xf32>
    %cst_33 = arith.constant dense<0.000000e+00> : vector<16xf32>
    %84 = vector.multi_reduction <add>, %83, %cst_33 [1] : vector<16x32xf32> to vector<16xf32>
    %85 = vector.shape_cast %84 : vector<16xf32> to vector<16x1xf32>
    %cst_34 = arith.constant dense<0.000000e+00> : vector<1xf32>
    %86 = vector.multi_reduction <add>, %85, %cst_34 [0] : vector<16x1xf32> to vector<1xf32>
    %87 = vector.shape_cast %86 : vector<1xf32> to vector<1x1xf32>
    %88 = arith.addf %82, %87 : vector<1x1xf32>
    %cst_35 = arith.constant 3.125000e-06 : f32
    %89 = vector.broadcast %cst_35 : f32 to vector<1x1xf32>
    %90 = arith.mulf %89, %88 : vector<1x1xf32>
    %cst_36 = arith.constant 5.000000e+00 : f32
    %91 = vector.broadcast %cst_36 : f32 to vector<16x32xf32>
    %92 = arith.mulf %45, %91 : vector<16x32xf32>
    %cst_37 = arith.constant 5.000000e+00 : f32
    %93 = vector.broadcast %cst_37 : f32 to vector<16x32xf32>
    %94 = arith.mulf %48, %93 : vector<16x32xf32>
    %95 = tpu.transpose %92, [1, 0] : vector<16x32xf32> -> vector<32x16xf32>
    %cst_38 = arith.constant dense<0.000000e+00> : vector<64x16xf32>
    %96 = tpu.matmul %22, %95, %cst_38 {dimension_numbers = #tpu.dot_dimension_numbers<[1], [0], [0], [1], [0, 0, 1, 1], [], []>} : vector<64x32xf32>, vector<32x16xf32>, vector<64x16xf32> -> vector<64x16xf32>
    %97 = tpu.transpose %94, [1, 0] : vector<16x32xf32> -> vector<32x16xf32>
    %cst_39 = arith.constant dense<0.000000e+00> : vector<96x16xf32>
    %98 = tpu.matmul %23, %97, %cst_39 {dimension_numbers = #tpu.dot_dimension_numbers<[1], [0], [0], [1], [0, 0, 1, 1], [], []>} : vector<96x32xf32>, vector<32x16xf32>, vector<96x16xf32> -> vector<96x16xf32>
    %cst_40 = arith.constant dense<0xFF800000> : vector<16xf32>
    %99 = vector.multi_reduction <maximumf>, %96, %cst_40 [0] : vector<64x16xf32> to vector<16xf32>
    %100 = vector.shape_cast %99 : vector<16xf32> to vector<1x16xf32>
    %cst_41 = arith.constant dense<0xFF800000> : vector<16xf32>
    %101 = vector.multi_reduction <maximumf>, %98, %cst_41 [0] : vector<96x16xf32> to vector<16xf32>
    %102 = vector.shape_cast %101 : vector<16xf32> to vector<1x16xf32>
    %103 = vector.broadcast %100 : vector<1x16xf32> to vector<64x16xf32>
    %104 = arith.subf %96, %103 : vector<64x16xf32>
    %105 = math.exp %104 : vector<64x16xf32>
    %cst_42 = arith.constant dense<0.000000e+00> : vector<16xf32>
    %106 = vector.multi_reduction <add>, %105, %cst_42 [0] : vector<64x16xf32> to vector<16xf32>
    %107 = vector.shape_cast %106 : vector<16xf32> to vector<1x16xf32>
    %cst_43 = arith.constant 9.99999993E-9 : f32
    %108 = vector.broadcast %cst_43 : f32 to vector<1x16xf32>
    %109 = arith.addf %107, %108 : vector<1x16xf32>
    %110 = math.log %109 : vector<1x16xf32>
    %111 = arith.addf %100, %110 : vector<1x16xf32>
    %112 = vector.broadcast %102 : vector<1x16xf32> to vector<96x16xf32>
    %113 = arith.subf %98, %112 : vector<96x16xf32>
    %114 = math.exp %113 : vector<96x16xf32>
    %cst_44 = arith.constant dense<0.000000e+00> : vector<16xf32>
    %115 = vector.multi_reduction <add>, %114, %cst_44 [0] : vector<96x16xf32> to vector<16xf32>
    %116 = vector.shape_cast %115 : vector<16xf32> to vector<1x16xf32>
    %cst_45 = arith.constant 9.99999993E-9 : f32
    %117 = vector.broadcast %cst_45 : f32 to vector<1x16xf32>
    %118 = arith.addf %116, %117 : vector<1x16xf32>
    %119 = math.log %118 : vector<1x16xf32>
    %120 = arith.addf %102, %119 : vector<1x16xf32>
    %cst_46 = arith.constant dense<0.000000e+00> : vector<1xf32>
    %121 = vector.multi_reduction <add>, %111, %cst_46 [1] : vector<1x16xf32> to vector<1xf32>
    %122 = vector.shape_cast %121 : vector<1xf32> to vector<1x1xf32>
    %cst_47 = arith.constant 1.600000e+01 : f32
    %123 = vector.broadcast %cst_47 : f32 to vector<1x1xf32>
    %124 = arith.divf %122, %123 : vector<1x1xf32>
    %cst_48 = arith.constant dense<0.000000e+00> : vector<1xf32>
    %125 = vector.multi_reduction <add>, %120, %cst_48 [1] : vector<1x16xf32> to vector<1xf32>
    %126 = vector.shape_cast %125 : vector<1xf32> to vector<1x1xf32>
    %cst_49 = arith.constant 1.600000e+01 : f32
    %127 = vector.broadcast %cst_49 : f32 to vector<1x1xf32>
    %128 = arith.divf %126, %127 : vector<1x1xf32>
    %129 = arith.addf %124, %128 : vector<1x1xf32>
    %130 = arith.mulf %43, %92 : vector<16x32xf32>
    %cst_50 = arith.constant dense<0.000000e+00> : vector<16xf32>
    %131 = vector.multi_reduction <add>, %130, %cst_50 [1] : vector<16x32xf32> to vector<16xf32>
    %132 = vector.shape_cast %131 : vector<16xf32> to vector<16x1xf32>
    %cst_51 = arith.constant -5.000000e+00 : f32
    %cst_52 = arith.constant 5.000000e+00 : f32
    %133 = vector.broadcast %cst_51 : f32 to vector<16x1xf32>
    %134 = arith.maximumf %133, %132 : vector<16x1xf32>
    %135 = vector.broadcast %cst_52 : f32 to vector<16x1xf32>
    %136 = arith.minimumf %135, %134 : vector<16x1xf32>
    %137 = arith.mulf %46, %94 : vector<16x32xf32>
    %cst_53 = arith.constant dense<0.000000e+00> : vector<16xf32>
    %138 = vector.multi_reduction <add>, %137, %cst_53 [1] : vector<16x32xf32> to vector<16xf32>
    %139 = vector.shape_cast %138 : vector<16xf32> to vector<16x1xf32>
    %cst_54 = arith.constant -5.000000e+00 : f32
    %cst_55 = arith.constant 5.000000e+00 : f32
    %140 = vector.broadcast %cst_54 : f32 to vector<16x1xf32>
    %141 = arith.maximumf %140, %139 : vector<16x1xf32>
    %142 = vector.broadcast %cst_55 : f32 to vector<16x1xf32>
    %143 = arith.minimumf %142, %141 : vector<16x1xf32>
    %cst_56 = arith.constant dense<0.000000e+00> : vector<1xf32>
    %144 = vector.multi_reduction <add>, %136, %cst_56 [0] : vector<16x1xf32> to vector<1xf32>
    %145 = vector.shape_cast %144 : vector<1xf32> to vector<1x1xf32>
    %cst_57 = arith.constant 1.600000e+01 : f32
    %146 = vector.broadcast %cst_57 : f32 to vector<1x1xf32>
    %147 = arith.divf %145, %146 : vector<1x1xf32>
    %cst_58 = arith.constant dense<0.000000e+00> : vector<1xf32>
    %148 = vector.multi_reduction <add>, %143, %cst_58 [0] : vector<16x1xf32> to vector<1xf32>
    %149 = vector.shape_cast %148 : vector<1xf32> to vector<1x1xf32>
    %cst_59 = arith.constant 1.600000e+01 : f32
    %150 = vector.broadcast %cst_59 : f32 to vector<1x1xf32>
    %151 = arith.divf %149, %150 : vector<1x1xf32>
    %152 = arith.addf %147, %151 : vector<1x1xf32>
    %153 = arith.subf %129, %152 : vector<1x1xf32>
    %cst_60 = arith.constant 1.000000e-01 : f32
    %154 = vector.broadcast %cst_60 : f32 to vector<1x1xf32>
    %155 = arith.mulf %154, %153 : vector<1x1xf32>
    %156 = tpu.iota {dimensions = array<i32: 1>} : vector<1x128xi32>
    %c0_i32 = arith.constant 0 : i32
    %157 = vector.broadcast %c0_i32 : i32 to vector<1x128xi32>
    %158 = arith.cmpi eq, %156, %157 : vector<1x128xi32>
    %c1_i32 = arith.constant 1 : i32
    %159 = vector.broadcast %c1_i32 : i32 to vector<1x128xi32>
    %160 = arith.cmpi eq, %156, %159 : vector<1x128xi32>
    %c2_i32 = arith.constant 2 : i32
    %161 = vector.broadcast %c2_i32 : i32 to vector<1x128xi32>
    %162 = arith.cmpi eq, %156, %161 : vector<1x128xi32>
    %cst_61 = arith.constant 0.000000e+00 : f32
    %163 = vector.shape_cast %155 : vector<1x1xf32> to vector<1x1xf32>
    %164 = vector.broadcast %163 : vector<1x1xf32> to vector<1x128xf32>
    %165 = vector.broadcast %cst_61 : f32 to vector<1x128xf32>
    %166 = arith.select %162, %164, %165 : vector<1x128xi1>, vector<1x128xf32>
    %167 = vector.shape_cast %90 : vector<1x1xf32> to vector<1x1xf32>
    %168 = vector.broadcast %167 : vector<1x1xf32> to vector<1x128xf32>
    %169 = arith.select %160, %168, %166 : vector<1x128xi1>, vector<1x128xf32>
    %170 = vector.shape_cast %71 : vector<1x1xf32> to vector<1x1xf32>
    %171 = vector.broadcast %170 : vector<1x1xf32> to vector<1x128xf32>
    %172 = arith.select %158, %171, %169 : vector<1x128xi1>, vector<1x128xf32>
    %c0_62 = arith.constant 0 : index
    %c0_63 = arith.constant 0 : index
    %173 = vector.load %arg7[%c0_62, %c0_63] : memref<1x128xf32, #tpu.memory_space<vmem>>, vector<1x128xf32>
    tpu.vector_store %arg7[%c0_62, %c0_63], %172 {strides = array<i32>} : memref<1x128xf32, #tpu.memory_space<vmem>>, vector<1x128xf32>,
    return
  }
}

</mosaic_0001>

<llo_original>
// kernel: tpu_custom_call.1
$region0: #{tpu_custom_call.1}
  #allocation0 [shape = 'u32[]', space=smem, size = 0x4, offset = 0x4, fixed_abs, tag = 'smem constant byte address 0x4 - core index']
  #allocation1 [shape = 'u32[144,128]{1,0:T(1,128)}', space=vmem, size = 0x12000, scoped, tag = 'internal scratch']
  %s0 = inlined_call_operand.vmem [shape: bf16[64,96], index: 0, kind: input, shape index: {}]
  %s1 = inlined_call_operand.vmem [shape: bf16[96,64], index: 1, kind: input, shape index: {}]
  %s2 = inlined_call_operand.vmem [shape: bf16[64,96], index: 2, kind: input, shape index: {}]
  %s3 = inlined_call_operand.vmem [shape: bf16[96,64], index: 3, kind: input, shape index: {}]
  %s4 = inlined_call_operand.vmem [shape: f32[64,32], index: 4, kind: input, shape index: {}]
  %s5 = inlined_call_operand.vmem [shape: f32[96,32], index: 5, kind: input, shape index: {}]
  %s6 = inlined_call_operand.vmem [shape: s32[48,1], index: 6, kind: input, shape index: {}]
  %s7 = inlined_call_operand.hbm [shape: f32[1,128], index: 7, kind: output, shape index: {}]
  %s8 = sld [smem:[#allocation0]]
  $region38: #{tpu_custom_call.1} parent=0
    _
  %s10 = ssub.s32 1, %s8
  %s11 = scalar_select 0, %s10, %s8
  $region1: #{tpu_custom_call.1} parent=0
    #allocation2 [shape = 'u8[512]{0}', space=vmem, size = 0x400, scoped, tag = 'output window, operand 0, single buffered']
    #allocation3 [shape = 's32[1]{0}', space=sflag, size = 0x4, scoped, tag = 'scoped memory for tpu_custom_call.1']
    %12 = vsyncpa [#allocation3], 0
    // Predicated region
    $region2: #{tpu_custom_call.1} parent=1 // pred_check
      _
    $region3: #{tpu_custom_call.1} parent=1 // pred_check_branch
      %14 = sbr.rel (0) target = $region5
    $region4: #{tpu_custom_call.1} parent=1 // pred_region
      _
    $region5: #{tpu_custom_call.1} parent=1 // pred_fallthru
      _
    // Predicated region
    $region6: #{tpu_custom_call.1} parent=1 // pred_check
      _
    $region7: #{tpu_custom_call.1} parent=1 // pred_check_branch
      %16 = sbr.rel (0) target = $region9
    $region8: #{tpu_custom_call.1} parent=1 // pred_region
      _
    $region9: #{tpu_custom_call.1} parent=1 // pred_fallthru
      _
    // Predicated region
    $region10: #{tpu_custom_call.1} parent=1 // pred_check
      _
    $region11: #{tpu_custom_call.1} parent=1 // pred_check_branch
      %18 = sbr.rel (0) target = $region13
    $region12: #{tpu_custom_call.1} parent=1 // pred_region
      _
    $region13: #{tpu_custom_call.1} parent=1 // pred_fallthru
      _
    // Predicated region
    $region14: #{tpu_custom_call.1} parent=1 // pred_check
      _
    $region15: #{tpu_custom_call.1} parent=1 // pred_check_branch
      %20 = sbr.rel (0) target = $region17
    $region16: #{tpu_custom_call.1} parent=1 // pred_region
      _
    $region17: #{tpu_custom_call.1} parent=1 // pred_fallthru
      _
    // Predicated region
    $region18: #{tpu_custom_call.1} parent=1 // pred_check
      _
    $region19: #{tpu_custom_call.1} parent=1 // pred_check_branch
      %22 = sbr.rel (0) target = $region21
    $region20: #{tpu_custom_call.1} parent=1 // pred_region
      _
    $region21: #{tpu_custom_call.1} parent=1 // pred_fallthru
      _
    // Predicated region
    $region22: #{tpu_custom_call.1} parent=1 // pred_check
      _
    $region23: #{tpu_custom_call.1} parent=1 // pred_check_branch
      %24 = sbr.rel (0) target = $region25
    $region24: #{tpu_custom_call.1} parent=1 // pred_region
      _
    $region25: #{tpu_custom_call.1} parent=1 // pred_fallthru
      _
    // Predicated region
    $region26: #{tpu_custom_call.1} parent=1 // pred_check
      _
    $region27: #{tpu_custom_call.1} parent=1 // pred_check_branch
      %26 = sbr.rel (0) target = $region29
    $region28: #{tpu_custom_call.1} parent=1 // pred_region
      _
    $region29: #{tpu_custom_call.1} parent=1 // pred_fallthru
      _
    %v28 = vld [vmem:[%s0] sm:$0xf]
    %v29 = vld [vmem:[%s0 + $0x4] sm:$0xf]
    %v30 = vld [vmem:[%s0 + $0x8] sm:$0xf]
    %v31 = vld [vmem:[%s0 + $0xc] sm:$0xf]
    %v32 = vld [vmem:[%s0 + $0x10] sm:$0xf]
    %v33 = vld [vmem:[%s0 + $0x14] sm:$0xf]
    %v34 = vld [vmem:[%s0 + $0x18] sm:$0xf]
    %v35 = vld [vmem:[%s0 + $0x1c] sm:$0xf]
    %v36 = vld [vmem:[%s1] sm:$0xf]
    %v37 = vld [vmem:[%s1 + $0x4] sm:$0xf]
    %v38 = vld [vmem:[%s1 + $0x8] sm:$0xf]
    %v39 = vld [vmem:[%s1 + $0xc] sm:$0xf]
    %v40 = vld [vmem:[%s1 + $0x10] sm:$0xf]
    %v41 = vld [vmem:[%s1 + $0x14] sm:$0xf]
    %v42 = vld [vmem:[%s1 + $0x18] sm:$0xf]
    %v43 = vld [vmem:[%s1 + $0x1c] sm:$0xf]
    %v44 = vld [vmem:[%s1 + $0x20] sm:$0xf]
    %v45 = vld [vmem:[%s1 + $0x24] sm:$0xf]
    %v46 = vld [vmem:[%s1 + $0x28] sm:$0xf]
    %v47 = vld [vmem:[%s1 + $0x2c] sm:$0xf]
    %v48 = vld [vmem:[%s2] sm:$0xf]
    %v49 = vld [vmem:[%s2 + $0x4] sm:$0xf]
    %v50 = vld [vmem:[%s2 + $0x8] sm:$0xf]
    %v51 = vld [vmem:[%s2 + $0xc] sm:$0xf]
    %v52 = vld [vmem:[%s2 + $0x10] sm:$0xf]
    %v53 = vld [vmem:[%s2 + $0x14] sm:$0xf]
    %v54 = vld [vmem:[%s2 + $0x18] sm:$0xf]
    %v55 = vld [vmem:[%s2 + $0x1c] sm:$0xf]
    %v56 = vld [vmem:[%s3] sm:$0xf]
    %v57 = vld [vmem:[%s3 + $0x4] sm:$0xf]
    %v58 = vld [vmem:[%s3 + $0x8] sm:$0xf]
    %v59 = vld [vmem:[%s3 + $0xc] sm:$0xf]
    %v60 = vld [vmem:[%s3 + $0x10] sm:$0xf]
    %v61 = vld [vmem:[%s3 + $0x14] sm:$0xf]
    %v62 = vld [vmem:[%s3 + $0x18] sm:$0xf]
    %v63 = vld [vmem:[%s3 + $0x1c] sm:$0xf]
    %v64 = vld [vmem:[%s3 + $0x20] sm:$0xf]
    %v65 = vld [vmem:[%s3 + $0x24] sm:$0xf]
    %v66 = vld [vmem:[%s3 + $0x28] sm:$0xf]
    %v67 = vld [vmem:[%s3 + $0x2c] sm:$0xf]
    %v68 = vld [vmem:[%s4] sm:$0xff]
    %v69 = vld [vmem:[%s4 + $0x8] sm:$0xff]
    %v70 = vld [vmem:[%s4 + $0x10] sm:$0xff]
    %v71 = vld [vmem:[%s4 + $0x18] sm:$0xff]
    %v72 = vld [vmem:[%s4 + $0x20] sm:$0xff]
    %v73 = vld [vmem:[%s4 + $0x28] sm:$0xff]
    %v74 = vld [vmem:[%s4 + $0x30] sm:$0xff]
    %v75 = vld [vmem:[%s4 + $0x38] sm:$0xff]
    %v76 = vld [vmem:[%s5] sm:$0xff]
    %v77 = vld [vmem:[%s5 + $0x8] sm:$0xff]
    %v78 = vld [vmem:[%s5 + $0x10] sm:$0xff]
    %v79 = vld [vmem:[%s5 + $0x18] sm:$0xff]
    %v80 = vld [vmem:[%s5 + $0x20] sm:$0xff]
    %v81 = vld [vmem:[%s5 + $0x28] sm:$0xff]
    %v82 = vld [vmem:[%s5 + $0x30] sm:$0xff]
    %v83 = vld [vmem:[%s5 + $0x38] sm:$0xff]
    %v84 = vld [vmem:[%s5 + $0x40] sm:$0xff]
    %v85 = vld [vmem:[%s5 + $0x48] sm:$0xff]
    %v86 = vld [vmem:[%s5 + $0x50] sm:$0xff]
    %v87 = vld [vmem:[%s5 + $0x58] sm:$0xff]
    %v88 = vpack.c.bf16 %v69, %v68
    %v89 = vpack.c.bf16 %v71, %v70
    %v90 = vpack.c.bf16 %v73, %v72
    %v91 = vpack.c.bf16 %v75, %v74
    %v92 = vpack.c.bf16 %v77, %v76
    %v93 = vpack.c.bf16 %v79, %v78
    %v94 = vpack.c.bf16 %v81, %v80
    %v95 = vpack.c.bf16 %v83, %v82
    %v96 = vpack.c.bf16 %v85, %v84
    %v97 = vpack.c.bf16 %v87, %v86
    %v106 = vunpack.c.l.b16 %v28
    %v107 = vunpack.c.l.b16 %v29
    %v108 = vunpack.c.l.b16 %v30
    %v109 = vunpack.c.l.b16 %v31
    %v110 = vunpack.c.l.b16 %v32
    %v111 = vunpack.c.l.b16 %v33
    %v112 = vunpack.c.l.b16 %v34
    %v113 = vunpack.c.l.b16 %v35
    %v114 = vpack.c.b16 %v107, %v106
    %v115 = vpack.c.b16 %v109, %v108
    %v116 = vpack.c.b16 %v111, %v110
    %v117 = vpack.c.b16 %v113, %v112
    %vm118 = vcmask 785408
    %v120 = vsel %vm118, %v114, 0
    %v123 = vsel %vm118, %v115, 0
    %v126 = vsel %vm118, %v116, 0
    %v129 = vsel %vm118, %v117, 0
    %131 = vmatprep.subr.bf16.mxu0 0
    %132 = vmatpush1.bf16.msra.mxu0 %v92
    %133 = vmatprep.subr.bf16.mxu0 0
    %134 = vmatpush1.bf16.msra.mxu0 %v93
    %135 = vmatprep.subr.bf16.mxu0 0
    %136 = vmatpush1.bf16.msra.mxu0 %v94
    %137 = vmatprep.subr.bf16.mxu0 0
    %138 = vmatpush1.bf16.msra.mxu0 %v95
    %139 = vmatprep.subr.bf16.mxu0 0
    %140 = vmatpush1.bf16.msra.mxu0 %v96
    %141 = vmatprep.subr.bf16.mxu0 0
    %142 = vmatpush1.bf16.msra.mxu0 %v97
    %143 = vmatprep.subr.bf16.mxu0 0
    %144 = vmatpush1.bf16.msra.mxu0 0
    %145 = vmatprep.subr.bf16.mxu0 0
    %146 = vmatpush1.bf16.msra.mxu0 0
    %147 = vmatprep.subr.bf16.mxu0 0
    %148 = vmatpush1.bf16.msra.mxu0 0
    %149 = vmatprep.subr.bf16.mxu0 0
    %150 = vmatpush1.bf16.msra.mxu0 0
    %151 = vmatprep.subr.bf16.mxu0 0
    %152 = vmatpush1.bf16.msra.mxu0 0
    %153 = vmatprep.subr.bf16.mxu0 0
    %154 = vmatpush1.bf16.msra.mxu0 0
    %155 = vmatprep.subr.bf16.mxu0 0
    %156 = vmatpush1.bf16.msra.mxu0 0
    %157 = vmatprep.subr.bf16.mxu0 0
    %158 = vmatpush1.bf16.msra.mxu0 0
    %159 = vmatprep.subr.bf16.mxu0 0
    %160 = vmatpush1.bf16.msra.mxu0 0
    %161 = vmatprep.subr.bf16.mxu0 0
    %162 = vmatpush1.bf16.msra.mxu0 0
    %163 = vmatprep.mubr.bf16.mxu0 0
    %164 = vmatmul.mubr.bf16.gmra.mrb[0].mxu0 %v120
    %v165 = vpop.f32.mrb[0].mxu0
    %v166 = vadd.f32 0.0, %v165
    %v167 = vpop.f32.mrb[0].mxu0
    %v168 = vpop.f32.mrb[0].mxu0
    %v169 = vadd.f32 0.0, %v168
    %v170 = vpop.f32.mrb[0].mxu0
    %171 = vmatprep.mubr.bf16.mxu0 0
    %172 = vmatmul.mubr.bf16.gmra.mrb[0].mxu0 %v123
    %v173 = vpop.f32.mrb[0].mxu0
    %v174 = vadd.f32 0.0, %v173
    %v175 = vpop.f32.mrb[0].mxu0
    %v176 = vpop.f32.mrb[0].mxu0
    %v177 = vadd.f32 0.0, %v176
    %v178 = vpop.f32.mrb[0].mxu0
    %179 = vmatprep.mubr.bf16.mxu0 0
    %180 = vmatmul.mubr.bf16.gmra.mrb[0].mxu0 %v126
    %v181 = vpop.f32.mrb[0].mxu0
    %v182 = vadd.f32 0.0, %v181
    %v183 = vpop.f32.mrb[0].mxu0
    %v184 = vpop.f32.mrb[0].mxu0
    %v185 = vadd.f32 0.0, %v184
    %v186 = vpop.f32.mrb[0].mxu0
    %187 = vmatprep.mubr.bf16.mxu0 0
    %188 = vmatmul.mubr.bf16.gmra.mrb[0].mxu0 %v129
    %v189 = vpop.f32.mrb[0].mxu0
    %v190 = vadd.f32 0.0, %v189
    %v191 = vpop.f32.mrb[0].mxu0
    %v192 = vpop.f32.mrb[0].mxu0
    %v193 = vadd.f32 0.0, %v192
    %v194 = vpop.f32.mrb[0].mxu0
    %195 = vdwg.mxu0
    %v208 = vunpack.c.l.b16 %v36
    %v209 = vunpack.c.l.b16 %v37
    %v210 = vunpack.c.l.b16 %v38
    %v211 = vunpack.c.l.b16 %v39
    %v212 = vunpack.c.l.b16 %v40
    %v213 = vunpack.c.l.b16 %v41
    %v214 = vunpack.c.l.b16 %v42
    %v215 = vunpack.c.l.b16 %v43
    %v216 = vunpack.c.l.b16 %v44
    %v217 = vunpack.c.l.b16 %v45
    %v218 = vunpack.c.l.b16 %v46
    %v219 = vunpack.c.l.b16 %v47
    %v220 = vpack.c.b16 %v209, %v208
    %v221 = vpack.c.b16 %v211, %v210
    %v222 = vpack.c.b16 %v213, %v212
    %v223 = vpack.c.b16 %v215, %v214
    %v224 = vpack.c.b16 %v217, %v216
    %v225 = vpack.c.b16 %v219, %v218
    %vm226 = vcmask 523264
    %v228 = vsel %vm226, %v220, 0
    %v231 = vsel %vm226, %v221, 0
    %v234 = vsel %vm226, %v222, 0
    %v237 = vsel %vm226, %v223, 0
    %v240 = vsel %vm226, %v224, 0
    %v243 = vsel %vm226, %v225, 0
    %245 = vmatprep.subr.bf16.mxu0 0
    %246 = vmatpush1.bf16.msra.mxu0 %v88
    %247 = vmatprep.subr.bf16.mxu0 0
    %248 = vmatpush1.bf16.msra.mxu0 %v89
    %249 = vmatprep.subr.bf16.mxu0 0
    %250 = vmatpush1.bf16.msra.mxu0 %v90
    %251 = vmatprep.subr.bf16.mxu0 0
    %252 = vmatpush1.bf16.msra.mxu0 %v91
    %253 = vmatprep.subr.bf16.mxu0 0
    %254 = vmatpush1.bf16.msra.mxu0 0
    %255 = vmatprep.subr.bf16.mxu0 0
    %256 = vmatpush1.bf16.msra.mxu0 0
    %257 = vmatprep.subr.bf16.mxu0 0
    %258 = vmatpush1.bf16.msra.mxu0 0
    %259 = vmatprep.subr.bf16.mxu0 0
    %260 = vmatpush1.bf16.msra.mxu0 0
    %261 = vmatprep.subr.bf16.mxu0 0
    %262 = vmatpush1.bf16.msra.mxu0 0
    %263 = vmatprep.subr.bf16.mxu0 0
    %264 = vmatpush1.bf16.msra.mxu0 0
    %265 = vmatprep.subr.bf16.mxu0 0
    %266 = vmatpush1.bf16.msra.mxu0 0
    %267 = vmatprep.subr.bf16.mxu0 0
    %268 = vmatpush1.bf16.msra.mxu0 0
    %269 = vmatprep.subr.bf16.mxu0 0
    %270 = vmatpush1.bf16.msra.mxu0 0
    %271 = vmatprep.subr.bf16.mxu0 0
    %272 = vmatpush1.bf16.msra.mxu0 0
    %273 = vmatprep.subr.bf16.mxu0 0
    %274 = vmatpush1.bf16.msra.mxu0 0
    %275 = vmatprep.subr.bf16.mxu0 0
    %276 = vmatpush1.bf16.msra.mxu0 0
    %277 = vmatprep.mubr.bf16.mxu0 0
    %278 = vmatmul.mubr.bf16.gmra.mrb[0].mxu0 %v228
    %v279 = vpop.f32.mrb[0].mxu0
    %v280 = vadd.f32 0.0, %v279
    %v281 = vpop.f32.mrb[0].mxu0
    %v282 = vpop.f32.mrb[0].mxu0
    %v283 = vadd.f32 0.0, %v282
    %v284 = vpop.f32.mrb[0].mxu0
    %285 = vmatprep.mubr.bf16.mxu0 0
    %286 = vmatmul.mubr.bf16.gmra.mrb[0].mxu0 %v231
    %v287 = vpop.f32.mrb[0].mxu0
    %v288 = vadd.f32 0.0, %v287
    %v289 = vpop.f32.mrb[0].mxu0
    %v290 = vpop.f32.mrb[0].mxu0
    %v291 = vadd.f32 0.0, %v290
    %v292 = vpop.f32.mrb[0].mxu0
    %293 = vmatprep.mubr.bf16.mxu0 0
    %294 = vmatmul.mubr.bf16.gmra.mrb[0].mxu0 %v234
    %v295 = vpop.f32.mrb[0].mxu0
    %v296 = vadd.f32 0.0, %v295
    %v297 = vpop.f32.mrb[0].mxu0
    %v298 = vpop.f32.mrb[0].mxu0
    %v299 = vadd.f32 0.0, %v298
    %v300 = vpop.f32.mrb[0].mxu0
    %301 = vmatprep.mubr.bf16.mxu0 0
    %302 = vmatmul.mubr.bf16.gmra.mrb[0].mxu0 %v237
    %v303 = vpop.f32.mrb[0].mxu0
    %v304 = vadd.f32 0.0, %v303
    %v305 = vpop.f32.mrb[0].mxu0
    %v306 = vpop.f32.mrb[0].mxu0
    %v307 = vadd.f32 0.0, %v306
    %v308 = vpop.f32.mrb[0].mxu0
    %309 = vmatprep.mubr.bf16.mxu0 0
    %310 = vmatmul.mubr.bf16.gmra.mrb[0].mxu0 %v240
    %v311 = vpop.f32.mrb[0].mxu0
    %v312 = vadd.f32 0.0, %v311
    %v313 = vpop.f32.mrb[0].mxu0
    %v314 = vpop.f32.mrb[0].mxu0
    %v315 = vadd.f32 0.0, %v314
    %v316 = vpop.f32.mrb[0].mxu0
    %317 = vmatprep.mubr.bf16.mxu0 0
    %318 = vmatmul.mubr.bf16.gmra.mrb[0].mxu0 %v243
    %v319 = vpop.f32.mrb[0].mxu0
    %v320 = vadd.f32 0.0, %v319
    %v321 = vpop.f32.mrb[0].mxu0
    %v322 = vpop.f32.mrb[0].mxu0
    %v323 = vadd.f32 0.0, %v322
    %v324 = vpop.f32.mrb[0].mxu0
    %325 = vdwg.mxu0
    %v334 = vunpack.c.l.b16 %v48
    %v335 = vunpack.c.l.b16 %v49
    %v336 = vunpack.c.l.b16 %v50
    %v337 = vunpack.c.l.b16 %v51
    %v338 = vunpack.c.l.b16 %v52
    %v339 = vunpack.c.l.b16 %v53
    %v340 = vunpack.c.l.b16 %v54
    %v341 = vunpack.c.l.b16 %v55
    %v342 = vpack.c.b16 %v335, %v334
    %v343 = vpack.c.b16 %v337, %v336
    %v344 = vpack.c.b16 %v339, %v338
    %v345 = vpack.c.b16 %v341, %v340
    %v347 = vsel %vm118, %v342, 0
    %v350 = vsel %vm118, %v343, 0
    %v353 = vsel %vm118, %v344, 0
    %v356 = vsel %vm118, %v345, 0
    %358 = vmatprep.subr.bf16.mxu0 0
    %359 = vmatpush1.bf16.msra.mxu0 %v92
    %360 = vmatprep.subr.bf16.mxu0 0
    %361 = vmatpush1.bf16.msra.mxu0 %v93
    %362 = vmatprep.subr.bf16.mxu0 0
    %363 = vmatpush1.bf16.msra.mxu0 %v94
    %364 = vmatprep.subr.bf16.mxu0 0
    %365 = vmatpush1.bf16.msra.mxu0 %v95
    %366 = vmatprep.subr.bf16.mxu0 0
    %367 = vmatpush1.bf16.msra.mxu0 %v96
    %368 = vmatprep.subr.bf16.mxu0 0
    %369 = vmatpush1.bf16.msra.mxu0 %v97
    %370 = vmatprep.subr.bf16.mxu0 0
    %371 = vmatpush1.bf16.msra.mxu0 0
    %372 = vmatprep.subr.bf16.mxu0 0
    %373 = vmatpush1.bf16.msra.mxu0 0
    %374 = vmatprep.subr.bf16.mxu0 0
    %375 = vmatpush1.bf16.msra.mxu0 0
    %376 = vmatprep.subr.bf16.mxu0 0
    %377 = vmatpush1.bf16.msra.mxu0 0
    %378 = vmatprep.subr.bf16.mxu0 0
    %379 = vmatpush1.bf16.msra.mxu0 0
    %380 = vmatprep.subr.bf16.mxu0 0
    %381 = vmatpush1.bf16.msra.mxu0 0
    %382 = vmatprep.subr.bf16.mxu0 0
    %383 = vmatpush1.bf16.msra.mxu0 0
    %384 = vmatprep.subr.bf16.mxu0 0
    %385 = vmatpush1.bf16.msra.mxu0 0
    %386 = vmatprep.subr.bf16.mxu0 0
    %387 = vmatpush1.bf16.msra.mxu0 0
    %388 = vmatprep.subr.bf16.mxu0 0
    %389 = vmatpush1.bf16.msra.mxu0 0
    %390 = vmatprep.mubr.bf16.mxu0 0
    %391 = vmatmul.mubr.bf16.gmra.mrb[0].mxu0 %v347
    %v392 = vpop.f32.mrb[0].mxu0
    %v393 = vadd.f32 0.0, %v392
    %v394 = vpop.f32.mrb[0].mxu0
    %v395 = vpop.f32.mrb[0].mxu0
    %v396 = vadd.f32 0.0, %v395
    %v397 = vpop.f32.mrb[0].mxu0
    %398 = vmatprep.mubr.bf16.mxu0 0
    %399 = vmatmul.mubr.bf16.gmra.mrb[0].mxu0 %v350
    %v400 = vpop.f32.mrb[0].mxu0
    %v401 = vadd.f32 0.0, %v400
    %v402 = vpop.f32.mrb[0].mxu0
    %v403 = vpop.f32.mrb[0].mxu0
    %v404 = vadd.f32 0.0, %v403
    %v405 = vpop.f32.mrb[0].mxu0
    %406 = vmatprep.mubr.bf16.mxu0 0
    %407 = vmatmul.mubr.bf16.gmra.mrb[0].mxu0 %v353
    %v408 = vpop.f32.mrb[0].mxu0
    %v409 = vadd.f32 0.0, %v408
    %v410 = vpop.f32.mrb[0].mxu0
    %v411 = vpop.f32.mrb[0].mxu0
    %v412 = vadd.f32 0.0, %v411
    %v413 = vpop.f32.mrb[0].mxu0
    %414 = vmatprep.mubr.bf16.mxu0 0
    %415 = vmatmul.mubr.bf16.gmra.mrb[0].mxu0 %v356
    %v416 = vpop.f32.mrb[0].mxu0
    %v417 = vadd.f32 0.0, %v416
    %v418 = vpop.f32.mrb[0].mxu0
    %v419 = vpop.f32.mrb[0].mxu0
    %v420 = vadd.f32 0.0, %v419
    %v421 = vpop.f32.mrb[0].mxu0
    %422 = vdwg.mxu0
    %v435 = vunpack.c.l.b16 %v56
    %v436 = vunpack.c.l.b16 %v57
    %v437 = vunpack.c.l.b16 %v58
    %v438 = vunpack.c.l.b16 %v59
    %v439 = vunpack.c.l.b16 %v60
    %v440 = vunpack.c.l.b16 %v61
    %v441 = vunpack.c.l.b16 %v62
    %v442 = vunpack.c.l.b16 %v63
    %v443 = vunpack.c.l.b16 %v64
    %v444 = vunpack.c.l.b16 %v65
    %v445 = vunpack.c.l.b16 %v66
    %v446 = vunpack.c.l.b16 %v67
    %v447 = vpack.c.b16 %v436, %v435
    %v448 = vpack.c.b16 %v438, %v437
    %v449 = vpack.c.b16 %v440, %v439
    %v450 = vpack.c.b16 %v442, %v441
    %v451 = vpack.c.b16 %v444, %v443
    %v452 = vpack.c.b16 %v446, %v445
    %v454 = vsel %vm226, %v447, 0
    %v457 = vsel %vm226, %v448, 0
    %v460 = vsel %vm226, %v449, 0
    %v463 = vsel %vm226, %v450, 0
    %v466 = vsel %vm226, %v451, 0
    %v469 = vsel %vm226, %v452, 0
    %471 = vmatprep.subr.bf16.mxu0 0
    %472 = vmatpush1.bf16.msra.mxu0 %v88
    %473 = vmatprep.subr.bf16.mxu0 0
    %474 = vmatpush1.bf16.msra.mxu0 %v89
    %475 = vmatprep.subr.bf16.mxu0 0
    %476 = vmatpush1.bf16.msra.mxu0 %v90
    %477 = vmatprep.subr.bf16.mxu0 0
    %478 = vmatpush1.bf16.msra.mxu0 %v91
    %479 = vmatprep.subr.bf16.mxu0 0
    %480 = vmatpush1.bf16.msra.mxu0 0
    %481 = vmatprep.subr.bf16.mxu0 0
    %482 = vmatpush1.bf16.msra.mxu0 0
    %483 = vmatprep.subr.bf16.mxu0 0
    %484 = vmatpush1.bf16.msra.mxu0 0
    %485 = vmatprep.subr.bf16.mxu0 0
    %486 = vmatpush1.bf16.msra.mxu0 0
    %487 = vmatprep.subr.bf16.mxu0 0
    %488 = vmatpush1.bf16.msra.mxu0 0
    %489 = vmatprep.subr.bf16.mxu0 0
    %490 = vmatpush1.bf16.msra.mxu0 0
    %491 = vmatprep.subr.bf16.mxu0 0
    %492 = vmatpush1.bf16.msra.mxu0 0
    %493 = vmatprep.subr.bf16.mxu0 0
    %494 = vmatpush1.bf16.msra.mxu0 0
    %495 = vmatprep.subr.bf16.mxu0 0
    %496 = vmatpush1.bf16.msra.mxu0 0
    %497 = vmatprep.subr.bf16.mxu0 0
    %498 = vmatpush1.bf16.msra.mxu0 0
    %499 = vmatprep.subr.bf16.mxu0 0
    %500 = vmatpush1.bf16.msra.mxu0 0
    %501 = vmatprep.subr.bf16.mxu0 0
    %502 = vmatpush1.bf16.msra.mxu0 0
    %503 = vmatprep.mubr.bf16.mxu0 0
    %504 = vmatmul.mubr.bf16.gmra.mrb[0].mxu0 %v454
    %v505 = vpop.f32.mrb[0].mxu0
    %v506 = vadd.f32 0.0, %v505
    %v507 = vpop.f32.mrb[0].mxu0
    %v508 = vpop.f32.mrb[0].mxu0
    %v509 = vadd.f32 0.0, %v508
    %v510 = vpop.f32.mrb[0].mxu0
    %511 = vmatprep.mubr.bf16.mxu0 0
    %512 = vmatmul.mubr.bf16.gmra.mrb[0].mxu0 %v457
    %v513 = vpop.f32.mrb[0].mxu0
    %v514 = vadd.f32 0.0, %v513
    %v515 = vpop.f32.mrb[0].mxu0
    %v516 = vpop.f32.mrb[0].mxu0
    %v517 = vadd.f32 0.0, %v516
    %v518 = vpop.f32.mrb[0].mxu0
    %519 = vmatprep.mubr.bf16.mxu0 0
    %520 = vmatmul.mubr.bf16.gmra.mrb[0].mxu0 %v460
    %v521 = vpop.f32.mrb[0].mxu0
    %v522 = vadd.f32 0.0, %v521
    %v523 = vpop.f32.mrb[0].mxu0
    %v524 = vpop.f32.mrb[0].mxu0
    %v525 = vadd.f32 0.0, %v524
    %v526 = vpop.f32.mrb[0].mxu0
    %527 = vmatprep.mubr.bf16.mxu0 0
    %528 = vmatmul.mubr.bf16.gmra.mrb[0].mxu0 %v463
    %v529 = vpop.f32.mrb[0].mxu0
    %v530 = vadd.f32 0.0, %v529
    %v531 = vpop.f32.mrb[0].mxu0
    %v532 = vpop.f32.mrb[0].mxu0
    %v533 = vadd.f32 0.0, %v532
    %v534 = vpop.f32.mrb[0].mxu0
    %535 = vmatprep.mubr.bf16.mxu0 0
    %536 = vmatmul.mubr.bf16.gmra.mrb[0].mxu0 %v466
    %v537 = vpop.f32.mrb[0].mxu0
    %v538 = vadd.f32 0.0, %v537
    %v539 = vpop.f32.mrb[0].mxu0
    %v540 = vpop.f32.mrb[0].mxu0
    %v541 = vadd.f32 0.0, %v540
    %v542 = vpop.f32.mrb[0].mxu0
    %543 = vmatprep.mubr.bf16.mxu0 0
    %544 = vmatmul.mubr.bf16.gmra.mrb[0].mxu0 %v469
    %v545 = vpop.f32.mrb[0].mxu0
    %v546 = vadd.f32 0.0, %v545
    %v547 = vpop.f32.mrb[0].mxu0
    %v548 = vpop.f32.mrb[0].mxu0
    %v549 = vadd.f32 0.0, %v548
    %v550 = vpop.f32.mrb[0].mxu0
    %551 = vdwg.mxu0
    %v552 = vadd.f32 %v68, %v166
    %v553 = vadd.f32 %v69, %v169
    %v554 = vadd.f32 %v70, %v174
    %v555 = vadd.f32 %v71, %v177
    %v556 = vadd.f32 %v72, %v182
    %v557 = vadd.f32 %v73, %v185
    %v558 = vadd.f32 %v74, %v190
    %v559 = vadd.f32 %v75, %v193
    %v560 = vadd.f32 %v76, %v280
    %v561 = vadd.f32 %v77, %v283
    %v562 = vadd.f32 %v78, %v288
    %v563 = vadd.f32 %v79, %v291
    %v564 = vadd.f32 %v80, %v296
    %v565 = vadd.f32 %v81, %v299
    %v566 = vadd.f32 %v82, %v304
    %v567 = vadd.f32 %v83, %v307
    %v568 = vadd.f32 %v84, %v312
    %v569 = vadd.f32 %v85, %v315
    %v570 = vadd.f32 %v86, %v320
    %v571 = vadd.f32 %v87, %v323
    %v572 = vadd.f32 %v68, %v393
    %v573 = vadd.f32 %v69, %v396
    %v574 = vadd.f32 %v70, %v401
    %v575 = vadd.f32 %v71, %v404
    %v576 = vadd.f32 %v72, %v409
    %v577 = vadd.f32 %v73, %v412
    %v578 = vadd.f32 %v74, %v417
    %v579 = vadd.f32 %v75, %v420
    %v580 = vadd.f32 %v76, %v506
    %v581 = vadd.f32 %v77, %v509
    %v582 = vadd.f32 %v78, %v514
    %v583 = vadd.f32 %v79, %v517
    %v584 = vadd.f32 %v80, %v522
    %v585 = vadd.f32 %v81, %v525
    %v586 = vadd.f32 %v82, %v530
    %v587 = vadd.f32 %v83, %v533
    %v588 = vadd.f32 %v84, %v538
    %v589 = vadd.f32 %v85, %v541
    %v590 = vadd.f32 %v86, %v546
    %v591 = vadd.f32 %v87, %v549
    %v592 = vpack.c.bf16 %v169, %v166
    %v593 = vpack.c.bf16 %v177, %v174
    %v594 = vpack.c.bf16 %v185, %v182
    %v595 = vpack.c.bf16 %v193, %v190
    %v596 = vpack.c.bf16 %v283, %v280
    %v597 = vpack.c.bf16 %v291, %v288
    %v598 = vpack.c.bf16 %v299, %v296
    %v599 = vpack.c.bf16 %v307, %v304
    %v600 = vpack.c.bf16 %v315, %v312
    %v601 = vpack.c.bf16 %v323, %v320
    %602 = vmatprep.subr.bf16.mxu0 0
    %603 = vmatpush1.bf16.msra.mxu0 %v596
    %604 = vmatprep.subr.bf16.mxu0 0
    %605 = vmatpush1.bf16.msra.mxu0 %v597
    %606 = vmatprep.subr.bf16.mxu0 0
    %607 = vmatpush1.bf16.msra.mxu0 %v598
    %608 = vmatprep.subr.bf16.mxu0 0
    %609 = vmatpush1.bf16.msra.mxu0 %v599
    %610 = vmatprep.subr.bf16.mxu0 0
    %611 = vmatpush1.bf16.msra.mxu0 %v600
    %612 = vmatprep.subr.bf16.mxu0 0
    %613 = vmatpush1.bf16.msra.mxu0 %v601
    %614 = vmatprep.subr.bf16.mxu0 0
    %615 = vmatpush1.bf16.msra.mxu0 0
    %616 = vmatprep.subr.bf16.mxu0 0
    %617 = vmatpush1.bf16.msra.mxu0 0
    %618 = vmatprep.subr.bf16.mxu0 0
    %619 = vmatpush1.bf16.msra.mxu0 0
    %620 = vmatprep.subr.bf16.mxu0 0
    %621 = vmatpush1.bf16.msra.mxu0 0
    %622 = vmatprep.subr.bf16.mxu0 0
    %623 = vmatpush1.bf16.msra.mxu0 0
    %624 = vmatprep.subr.bf16.mxu0 0
    %625 = vmatpush1.bf16.msra.mxu0 0
    %626 = vmatprep.subr.bf16.mxu0 0
    %627 = vmatpush1.bf16.msra.mxu0 0
    %628 = vmatprep.subr.bf16.mxu0 0
    %629 = vmatpush1.bf16.msra.mxu0 0
    %630 = vmatprep.subr.bf16.mxu0 0
    %631 = vmatpush1.bf16.msra.mxu0 0
    %632 = vmatprep.subr.bf16.mxu0 0
    %633 = vmatpush1.bf16.msra.mxu0 0
    %634 = vmatprep.mubr.bf16.mxu0 0
    %635 = vmatmul.mubr.bf16.gmra.mrb[0].mxu0 %v120
    %v636 = vpop.f32.mrb[0].mxu0
    %v637 = vadd.f32 0.0, %v636
    %v638 = vpop.f32.mrb[0].mxu0
    %v639 = vpop.f32.mrb[0].mxu0
    %v640 = vadd.f32 0.0, %v639
    %v641 = vpop.f32.mrb[0].mxu0
    %642 = vmatprep.mubr.bf16.mxu0 0
    %643 = vmatmul.mubr.bf16.gmra.mrb[0].mxu0 %v123
    %v644 = vpop.f32.mrb[0].mxu0
    %v645 = vadd.f32 0.0, %v644
    %v646 = vpop.f32.mrb[0].mxu0
    %v647 = vpop.f32.mrb[0].mxu0
    %v648 = vadd.f32 0.0, %v647
    %v649 = vpop.f32.mrb[0].mxu0
    %650 = vmatprep.mubr.bf16.mxu0 0
    %651 = vmatmul.mubr.bf16.gmra.mrb[0].mxu0 %v126
    %v652 = vpop.f32.mrb[0].mxu0
    %v653 = vadd.f32 0.0, %v652
    %v654 = vpop.f32.mrb[0].mxu0
    %v655 = vpop.f32.mrb[0].mxu0
    %v656 = vadd.f32 0.0, %v655
    %v657 = vpop.f32.mrb[0].mxu0
    %658 = vmatprep.mubr.bf16.mxu0 0
    %659 = vmatmul.mubr.bf16.gmra.mrb[0].mxu0 %v129
    %v660 = vpop.f32.mrb[0].mxu0
    %v661 = vadd.f32 0.0, %v660
    %v662 = vpop.f32.mrb[0].mxu0
    %v663 = vpop.f32.mrb[0].mxu0
    %v664 = vadd.f32 0.0, %v663
    %v665 = vpop.f32.mrb[0].mxu0
    %666 = vdwg.mxu0
    %667 = vmatprep.subr.bf16.mxu0 0
    %668 = vmatpush1.bf16.msra.mxu0 %v592
    %669 = vmatprep.subr.bf16.mxu0 0
    %670 = vmatpush1.bf16.msra.mxu0 %v593
    %671 = vmatprep.subr.bf16.mxu0 0
    %672 = vmatpush1.bf16.msra.mxu0 %v594
    %673 = vmatprep.subr.bf16.mxu0 0
    %674 = vmatpush1.bf16.msra.mxu0 %v595
    %675 = vmatprep.subr.bf16.mxu0 0
    %676 = vmatpush1.bf16.msra.mxu0 0
    %677 = vmatprep.subr.bf16.mxu0 0
    %678 = vmatpush1.bf16.msra.mxu0 0
    %679 = vmatprep.subr.bf16.mxu0 0
    %680 = vmatpush1.bf16.msra.mxu0 0
    %681 = vmatprep.subr.bf16.mxu0 0
    %682 = vmatpush1.bf16.msra.mxu0 0
    %683 = vmatprep.subr.bf16.mxu0 0
    %684 = vmatpush1.bf16.msra.mxu0 0
    %685 = vmatprep.subr.bf16.mxu0 0
    %686 = vmatpush1.bf16.msra.mxu0 0
    %687 = vmatprep.subr.bf16.mxu0 0
    %688 = vmatpush1.bf16.msra.mxu0 0
    %689 = vmatprep.subr.bf16.mxu0 0
    %690 = vmatpush1.bf16.msra.mxu0 0
    %691 = vmatprep.subr.bf16.mxu0 0
    %692 = vmatpush1.bf16.msra.mxu0 0
    %693 = vmatprep.subr.bf16.mxu0 0
    %694 = vmatpush1.bf16.msra.mxu0 0
    %695 = vmatprep.subr.bf16.mxu0 0
    %696 = vmatpush1.bf16.msra.mxu0 0
    %697 = vmatprep.subr.bf16.mxu0 0
    %698 = vmatpush1.bf16.msra.mxu0 0
    %699 = vmatprep.mubr.bf16.mxu0 0
    %700 = vmatmul.mubr.bf16.gmra.mrb[0].mxu0 %v228
    %v701 = vpop.f32.mrb[0].mxu0
    %v702 = vadd.f32 0.0, %v701
    %v703 = vpop.f32.mrb[0].mxu0
    %v704 = vpop.f32.mrb[0].mxu0
    %v705 = vadd.f32 0.0, %v704
    %v706 = vpop.f32.mrb[0].mxu0
    %707 = vmatprep.mubr.bf16.mxu0 0
    %708 = vmatmul.mubr.bf16.gmra.mrb[0].mxu0 %v231
    %v709 = vpop.f32.mrb[0].mxu0
    %v710 = vadd.f32 0.0, %v709
    %v711 = vpop.f32.mrb[0].mxu0
    %v712 = vpop.f32.mrb[0].mxu0
    %v713 = vadd.f32 0.0, %v712
    %v714 = vpop.f32.mrb[0].mxu0
    %715 = vmatprep.mubr.bf16.mxu0 0
    %716 = vmatmul.mubr.bf16.gmra.mrb[0].mxu0 %v234
    %v717 = vpop.f32.mrb[0].mxu0
    %v718 = vadd.f32 0.0, %v717
    %v719 = vpop.f32.mrb[0].mxu0
    %v720 = vpop.f32.mrb[0].mxu0
    %v721 = vadd.f32 0.0, %v720
    %v722 = vpop.f32.mrb[0].mxu0
    %723 = vmatprep.mubr.bf16.mxu0 0
    %724 = vmatmul.mubr.bf16.gmra.mrb[0].mxu0 %v237
    %v725 = vpop.f32.mrb[0].mxu0
    %v726 = vadd.f32 0.0, %v725
    %v727 = vpop.f32.mrb[0].mxu0
    %v728 = vpop.f32.mrb[0].mxu0
    %v729 = vadd.f32 0.0, %v728
    %v730 = vpop.f32.mrb[0].mxu0
    %731 = vmatprep.mubr.bf16.mxu0 0
    %732 = vmatmul.mubr.bf16.gmra.mrb[0].mxu0 %v240
    %v733 = vpop.f32.mrb[0].mxu0
    %v734 = vadd.f32 0.0, %v733
    %v735 = vpop.f32.mrb[0].mxu0
    %v736 = vpop.f32.mrb[0].mxu0
    %v737 = vadd.f32 0.0, %v736
    %v738 = vpop.f32.mrb[0].mxu0
    %739 = vmatprep.mubr.bf16.mxu0 0
    %740 = vmatmul.mubr.bf16.gmra.mrb[0].mxu0 %v243
    %v741 = vpop.f32.mrb[0].mxu0
    %v742 = vadd.f32 0.0, %v741
    %v743 = vpop.f32.mrb[0].mxu0
    %v744 = vpop.f32.mrb[0].mxu0
    %v745 = vadd.f32 0.0, %v744
    %v746 = vpop.f32.mrb[0].mxu0
    %747 = vdwg.mxu0
    %748 = vmatprep.subr.bf16.mxu0 0
    %749 = vmatpush1.bf16.msra.mxu0 %v596
    %750 = vmatprep.subr.bf16.mxu0 0
    %751 = vmatpush1.bf16.msra.mxu0 %v597
    %752 = vmatprep.subr.bf16.mxu0 0
    %753 = vmatpush1.bf16.msra.mxu0 %v598
    %754 = vmatprep.subr.bf16.mxu0 0
    %755 = vmatpush1.bf16.msra.mxu0 %v599
    %756 = vmatprep.subr.bf16.mxu0 0
    %757 = vmatpush1.bf16.msra.mxu0 %v600
    %758 = vmatprep.subr.bf16.mxu0 0
    %759 = vmatpush1.bf16.msra.mxu0 %v601
    %760 = vmatprep.subr.bf16.mxu0 0
    %761 = vmatpush1.bf16.msra.mxu0 0
    %762 = vmatprep.subr.bf16.mxu0 0
    %763 = vmatpush1.bf16.msra.mxu0 0
    %764 = vmatprep.subr.bf16.mxu0 0
    %765 = vmatpush1.bf16.msra.mxu0 0
    %766 = vmatprep.subr.bf16.mxu0 0
    %767 = vmatpush1.bf16.msra.mxu0 0
    %768 = vmatprep.subr.bf16.mxu0 0
    %769 = vmatpush1.bf16.msra.mxu0 0
    %770 = vmatprep.subr.bf16.mxu0 0
    %771 = vmatpush1.bf16.msra.mxu0 0
    %772 = vmatprep.subr.bf16.mxu0 0
    %773 = vmatpush1.bf16.msra.mxu0 0
    %774 = vmatprep.subr.bf16.mxu0 0
    %775 = vmatpush1.bf16.msra.mxu0 0
    %776 = vmatprep.subr.bf16.mxu0 0
    %777 = vmatpush1.bf16.msra.mxu0 0
    %778 = vmatprep.subr.bf16.mxu0 0
    %779 = vmatpush1.bf16.msra.mxu0 0
    %780 = vmatprep.mubr.bf16.mxu0 0
    %781 = vmatmul.mubr.bf16.gmra.mrb[0].mxu0 %v347
    %v782 = vpop.f32.mrb[0].mxu0
    %v783 = vadd.f32 0.0, %v782
    %v784 = vpop.f32.mrb[0].mxu0
    %v785 = vpop.f32.mrb[0].mxu0
    %v786 = vadd.f32 0.0, %v785
    %v787 = vpop.f32.mrb[0].mxu0
    %788 = vmatprep.mubr.bf16.mxu0 0
    %789 = vmatmul.mubr.bf16.gmra.mrb[0].mxu0 %v350
    %v790 = vpop.f32.mrb[0].mxu0
    %v791 = vadd.f32 0.0, %v790
    %v792 = vpop.f32.mrb[0].mxu0
    %v793 = vpop.f32.mrb[0].mxu0
    %v794 = vadd.f32 0.0, %v793
    %v795 = vpop.f32.mrb[0].mxu0
    %796 = vmatprep.mubr.bf16.mxu0 0
    %797 = vmatmul.mubr.bf16.gmra.mrb[0].mxu0 %v353
    %v798 = vpop.f32.mrb[0].mxu0
    %v799 = vadd.f32 0.0, %v798
    %v800 = vpop.f32.mrb[0].mxu0
    %v801 = vpop.f32.mrb[0].mxu0
    %v802 = vadd.f32 0.0, %v801
    %v803 = vpop.f32.mrb[0].mxu0
    %804 = vmatprep.mubr.bf16.mxu0 0
    %805 = vmatmul.mubr.bf16.gmra.mrb[0].mxu0 %v356
    %v806 = vpop.f32.mrb[0].mxu0
    %v807 = vadd.f32 0.0, %v806
    %v808 = vpop.f32.mrb[0].mxu0
    %v809 = vpop.f32.mrb[0].mxu0
    %v810 = vadd.f32 0.0, %v809
    %v811 = vpop.f32.mrb[0].mxu0
    %812 = vdwg.mxu0
    %813 = vmatprep.subr.bf16.mxu0 0
    %814 = vmatpush1.bf16.msra.mxu0 %v592
    %815 = vmatprep.subr.bf16.mxu0 0
    %816 = vmatpush1.bf16.msra.mxu0 %v593
    %817 = vmatprep.subr.bf16.mxu0 0
    %818 = vmatpush1.bf16.msra.mxu0 %v594
    %819 = vmatprep.subr.bf16.mxu0 0
    %820 = vmatpush1.bf16.msra.mxu0 %v595
    %821 = vmatprep.subr.bf16.mxu0 0
    %822 = vmatpush1.bf16.msra.mxu0 0
    %823 = vmatprep.subr.bf16.mxu0 0
    %824 = vmatpush1.bf16.msra.mxu0 0
    %825 = vmatprep.subr.bf16.mxu0 0
    %826 = vmatpush1.bf16.msra.mxu0 0
    %827 = vmatprep.subr.bf16.mxu0 0
    %828 = vmatpush1.bf16.msra.mxu0 0
    %829 = vmatprep.subr.bf16.mxu0 0
    %830 = vmatpush1.bf16.msra.mxu0 0
    %831 = vmatprep.subr.bf16.mxu0 0
    %832 = vmatpush1.bf16.msra.mxu0 0
    %833 = vmatprep.subr.bf16.mxu0 0
    %834 = vmatpush1.bf16.msra.mxu0 0
    %835 = vmatprep.subr.bf16.mxu0 0
    %836 = vmatpush1.bf16.msra.mxu0 0
    %837 = vmatprep.subr.bf16.mxu0 0
    %838 = vmatpush1.bf16.msra.mxu0 0
    %839 = vmatprep.subr.bf16.mxu0 0
    %840 = vmatpush1.bf16.msra.mxu0 0
    %841 = vmatprep.subr.bf16.mxu0 0
    %842 = vmatpush1.bf16.msra.mxu0 0
    %843 = vmatprep.subr.bf16.mxu0 0
    %844 = vmatpush1.bf16.msra.mxu0 0
    %845 = vmatprep.mubr.bf16.mxu0 0
    %846 = vmatmul.mubr.bf16.gmra.mrb[0].mxu0 %v454
    %v847 = vpop.f32.mrb[0].mxu0
    %v848 = vadd.f32 0.0, %v847
    %v849 = vpop.f32.mrb[0].mxu0
    %v850 = vpop.f32.mrb[0].mxu0
    %v851 = vadd.f32 0.0, %v850
    %v852 = vpop.f32.mrb[0].mxu0
    %853 = vmatprep.mubr.bf16.mxu0 0
    %854 = vmatmul.mubr.bf16.gmra.mrb[0].mxu0 %v457
    %v855 = vpop.f32.mrb[0].mxu0
    %v856 = vadd.f32 0.0, %v855
    %v857 = vpop.f32.mrb[0].mxu0
    %v858 = vpop.f32.mrb[0].mxu0
    %v859 = vadd.f32 0.0, %v858
    %v860 = vpop.f32.mrb[0].mxu0
    %861 = vmatprep.mubr.bf16.mxu0 0
    %862 = vmatmul.mubr.bf16.gmra.mrb[0].mxu0 %v460
    %v863 = vpop.f32.mrb[0].mxu0
    %v864 = vadd.f32 0.0, %v863
    %v865 = vpop.f32.mrb[0].mxu0
    %v866 = vpop.f32.mrb[0].mxu0
    %v867 = vadd.f32 0.0, %v866
    %v868 = vpop.f32.mrb[0].mxu0
    %869 = vmatprep.mubr.bf16.mxu0 0
    %870 = vmatmul.mubr.bf16.gmra.mrb[0].mxu0 %v463
    %v871 = vpop.f32.mrb[0].mxu0
    %v872 = vadd.f32 0.0, %v871
    %v873 = vpop.f32.mrb[0].mxu0
    %v874 = vpop.f32.mrb[0].mxu0
    %v875 = vadd.f32 0.0, %v874
    %v876 = vpop.f32.mrb[0].mxu0
    %877 = vmatprep.mubr.bf16.mxu0 0
    %878 = vmatmul.mubr.bf16.gmra.mrb[0].mxu0 %v466
    %v879 = vpop.f32.mrb[0].mxu0
    %v880 = vadd.f32 0.0, %v879
    %v881 = vpop.f32.mrb[0].mxu0
    %v882 = vpop.f32.mrb[0].mxu0
    %v883 = vadd.f32 0.0, %v882
    %v884 = vpop.f32.mrb[0].mxu0
    %885 = vmatprep.mubr.bf16.mxu0 0
    %886 = vmatmul.mubr.bf16.gmra.mrb[0].mxu0 %v469
    %v887 = vpop.f32.mrb[0].mxu0
    %v888 = vadd.f32 0.0, %v887
    %v889 = vpop.f32.mrb[0].mxu0
    %v890 = vpop.f32.mrb[0].mxu0
    %v891 = vadd.f32 0.0, %v890
    %v892 = vpop.f32.mrb[0].mxu0
    %893 = vdwg.mxu0
    %v894 = vadd.f32 %v552, %v637
    %v895 = vadd.f32 %v553, %v640
    %v896 = vadd.f32 %v554, %v645
    %v897 = vadd.f32 %v555, %v648
    %v898 = vadd.f32 %v556, %v653
    %v899 = vadd.f32 %v557, %v656
    %v900 = vadd.f32 %v558, %v661
    %v901 = vadd.f32 %v559, %v664
    %v902 = vadd.f32 %v560, %v702
    %v903 = vadd.f32 %v561, %v705
    %v904 = vadd.f32 %v562, %v710
    %v905 = vadd.f32 %v563, %v713
    %v906 = vadd.f32 %v564, %v718
    %v907 = vadd.f32 %v565, %v721
    %v908 = vadd.f32 %v566, %v726
    %v909 = vadd.f32 %v567, %v729
    %v910 = vadd.f32 %v568, %v734
    %v911 = vadd.f32 %v569, %v737
    %v912 = vadd.f32 %v570, %v742
    %v913 = vadd.f32 %v571, %v745
    %v914 = vadd.f32 %v572, %v783
    %v915 = vadd.f32 %v573, %v786
    %v916 = vadd.f32 %v574, %v791
    %v917 = vadd.f32 %v575, %v794
    %v918 = vadd.f32 %v576, %v799
    %v919 = vadd.f32 %v577, %v802
    %v920 = vadd.f32 %v578, %v807
    %v921 = vadd.f32 %v579, %v810
    %v922 = vadd.f32 %v580, %v848
    %v923 = vadd.f32 %v581, %v851
    %v924 = vadd.f32 %v582, %v856
    %v925 = vadd.f32 %v583, %v859
    %v926 = vadd.f32 %v584, %v864
    %v927 = vadd.f32 %v585, %v867
    %v928 = vadd.f32 %v586, %v872
    %v929 = vadd.f32 %v587, %v875
    %v930 = vadd.f32 %v588, %v880
    %v931 = vadd.f32 %v589, %v883
    %v932 = vadd.f32 %v590, %v888
    %v933 = vadd.f32 %v591, %v891
    %v934 = vld [vmem:[%s6] sm:$0xff]
    %v935 = vld [vmem:[%s6 + $0x8] sm:$0xff]
    %v936 = vld [vmem:[%s6 + $0x10] sm:$0xff]
    %v937 = vld [vmem:[%s6 + $0x18] sm:$0xff]
    %v938 = vld [vmem:[%s6 + $0x20] sm:$0xff]
    %v939 = vld [vmem:[%s6 + $0x28] sm:$0xff]
    %v940 = vlaneseq
    %v941 = vand.u32 %v940, 127
    %942 = vset.pattern.permute.xlu0 0
    %943 = vperm.xlu0 %942, %v934
    %v944 = vpop.permute.xlu0 %943
    %945 = vset.pattern.permute.xlu0 0
    %946 = vperm.xlu0 %945, %v935
    %v947 = vpop.permute.xlu0 %946
    %vm948 = vcmp.eq.s32.totalorder %v944, %v941
    %vm949 = vcmp.eq.s32.totalorder %v947, %v941
    %v950 = vsel %vm948, 1, 0
    %v951 = vsel %vm949, 1, 0
    %v952 = vcvt.s32.f32 %v950
    %v953 = vcvt.s32.f32 %v951
    %954 = vset.pattern.permute.xlu0 0
    %955 = vperm.xlu0 %954, %v936
    %v956 = vpop.permute.xlu0 %955
    %957 = vset.pattern.permute.xlu0 0
    %958 = vperm.xlu0 %957, %v937
    %v959 = vpop.permute.xlu0 %958
    %960 = vset.pattern.permute.xlu0 0
    %961 = vperm.xlu0 %960, %v938
    %v962 = vpop.permute.xlu0 %961
    %963 = vset.pattern.permute.xlu0 0
    %964 = vperm.xlu0 %963, %v939
    %v965 = vpop.permute.xlu0 %964
    %vm966 = vcmp.eq.s32.totalorder %v956, %v941
    %vm967 = vcmp.eq.s32.totalorder %v959, %v941
    %vm968 = vcmp.eq.s32.totalorder %v962, %v941
    %vm969 = vcmp.eq.s32.totalorder %v965, %v941
    %v970 = vsel %vm966, 1, 0
    %v971 = vsel %vm967, 1, 0
    %v972 = vsel %vm968, 1, 0
    %v973 = vsel %vm969, 1, 0
    %v974 = vcvt.s32.f32 %v970
    %v975 = vcvt.s32.f32 %v971
    %v976 = vcvt.s32.f32 %v972
    %v977 = vcvt.s32.f32 %v973
    %986 = vrot.lane.b32.xlu0 %v68, 32
    %v987 = vpop.permute.xlu0 %986
    %988 = vrot.lane.b32.xlu0 %v69, 32
    %v989 = vpop.permute.xlu0 %988
    %990 = vrot.lane.b32.xlu0 %v70, 32
    %v991 = vpop.permute.xlu0 %990
    %992 = vrot.lane.b32.xlu0 %v71, 32
    %v993 = vpop.permute.xlu0 %992
    %994 = vrot.lane.b32.xlu0 %v72, 32
    %v995 = vpop.permute.xlu0 %994
    %996 = vrot.lane.b32.xlu0 %v73, 32
    %v997 = vpop.permute.xlu0 %996
    %998 = vrot.lane.b32.xlu0 %v74, 32
    %v999 = vpop.permute.xlu0 %998
    %1000 = vrot.lane.b32.xlu0 %v75, 32
    %v1001 = vpop.permute.xlu0 %1000
    %1018 = vrot.lane.b32.xlu0 %v914, 64
    %v1019 = vpop.permute.xlu0 %1018
    %1020 = vrot.lane.b32.xlu0 %v915, 64
    %v1021 = vpop.permute.xlu0 %1020
    %1022 = vrot.lane.b32.xlu0 %v916, 64
    %v1023 = vpop.permute.xlu0 %1022
    %1024 = vrot.lane.b32.xlu0 %v917, 64
    %v1025 = vpop.permute.xlu0 %1024
    %1026 = vrot.lane.b32.xlu0 %v918, 64
    %v1027 = vpop.permute.xlu0 %1026
    %1028 = vrot.lane.b32.xlu0 %v919, 64
    %v1029 = vpop.permute.xlu0 %1028
    %1030 = vrot.lane.b32.xlu0 %v920, 64
    %v1031 = vpop.permute.xlu0 %1030
    %1032 = vrot.lane.b32.xlu0 %v921, 64
    %v1033 = vpop.permute.xlu0 %1032
    %vm1042 = vcmask 261120
    %v1043 = vsel %vm1042, %v894, %v987
    %v1044 = vsel %vm1042, %v895, %v989
    %v1045 = vsel %vm1042, %v896, %v991
    %v1046 = vsel %vm1042, %v897, %v993
    %v1047 = vsel %vm1042, %v898, %v995
    %v1048 = vsel %vm1042, %v899, %v997
    %v1049 = vsel %vm1042, %v900, %v999
    %v1050 = vsel %vm1042, %v901, %v1001
    %v1051 = vsel %vm226, %v1043, %v1019
    %v1052 = vsel %vm226, %v1044, %v1021
    %v1053 = vsel %vm226, %v1045, %v1023
    %v1054 = vsel %vm226, %v1046, %v1025
    %v1055 = vsel %vm226, %v1047, %v1027
    %v1056 = vsel %vm226, %v1048, %v1029
    %v1057 = vsel %vm226, %v1049, %v1031
    %v1058 = vsel %vm226, %v1050, %v1033
    %1071 = vrot.lane.b32.xlu0 %v76, 32
    %v1072 = vpop.permute.xlu0 %1071
    %1073 = vrot.lane.b32.xlu0 %v77, 32
    %v1074 = vpop.permute.xlu0 %1073
    %1075 = vrot.lane.b32.xlu0 %v78, 32
    %v1076 = vpop.permute.xlu0 %1075
    %1077 = vrot.lane.b32.xlu0 %v79, 32
    %v1078 = vpop.permute.xlu0 %1077
    %1079 = vrot.lane.b32.xlu0 %v80, 32
    %v1080 = vpop.permute.xlu0 %1079
    %1081 = vrot.lane.b32.xlu0 %v81, 32
    %v1082 = vpop.permute.xlu0 %1081
    %1083 = vrot.lane.b32.xlu0 %v82, 32
    %v1084 = vpop.permute.xlu0 %1083
    %1085 = vrot.lane.b32.xlu0 %v83, 32
    %v1086 = vpop.permute.xlu0 %1085
    %1087 = vrot.lane.b32.xlu0 %v84, 32
    %v1088 = vpop.permute.xlu0 %1087
    %1089 = vrot.lane.b32.xlu0 %v85, 32
    %v1090 = vpop.permute.xlu0 %1089
    %1091 = vrot.lane.b32.xlu0 %v86, 32
    %v1092 = vpop.permute.xlu0 %1091
    %1093 = vrot.lane.b32.xlu0 %v87, 32
    %v1094 = vpop.permute.xlu0 %1093
    %1119 = vrot.lane.b32.xlu0 %v922, 64
    %v1120 = vpop.permute.xlu0 %1119
    %1121 = vrot.lane.b32.xlu0 %v923, 64
    %v1122 = vpop.permute.xlu0 %1121
    %1123 = vrot.lane.b32.xlu0 %v924, 64
    %v1124 = vpop.permute.xlu0 %1123
    %1125 = vrot.lane.b32.xlu0 %v925, 64
    %v1126 = vpop.permute.xlu0 %1125
    %1127 = vrot.lane.b32.xlu0 %v926, 64
    %v1128 = vpop.permute.xlu0 %1127
    %1129 = vrot.lane.b32.xlu0 %v927, 64
    %v1130 = vpop.permute.xlu0 %1129
    %1131 = vrot.lane.b32.xlu0 %v928, 64
    %v1132 = vpop.permute.xlu0 %1131
    %1133 = vrot.lane.b32.xlu0 %v929, 64
    %v1134 = vpop.permute.xlu0 %1133
    %1135 = vrot.lane.b32.xlu0 %v930, 64
    %v1136 = vpop.permute.xlu0 %1135
    %1137 = vrot.lane.b32.xlu0 %v931, 64
    %v1138 = vpop.permute.xlu0 %1137
    %1139 = vrot.lane.b32.xlu0 %v932, 64
    %v1140 = vpop.permute.xlu0 %1139
    %1141 = vrot.lane.b32.xlu0 %v933, 64
    %v1142 = vpop.permute.xlu0 %1141
    %v1155 = vsel %vm1042, %v902, %v1072
    %v1156 = vsel %vm1042, %v903, %v1074
    %v1157 = vsel %vm1042, %v904, %v1076
    %v1158 = vsel %vm1042, %v905, %v1078
    %v1159 = vsel %vm1042, %v906, %v1080
    %v1160 = vsel %vm1042, %v907, %v1082
    %v1161 = vsel %vm1042, %v908, %v1084
    %v1162 = vsel %vm1042, %v909, %v1086
    %v1163 = vsel %vm1042, %v910, %v1088
    %v1164 = vsel %vm1042, %v911, %v1090
    %v1165 = vsel %vm1042, %v912, %v1092
    %v1166 = vsel %vm1042, %v913, %v1094
    %v1167 = vsel %vm226, %v1155, %v1120
    %v1168 = vsel %vm226, %v1156, %v1122
    %v1169 = vsel %vm226, %v1157, %v1124
    %v1170 = vsel %vm226, %v1158, %v1126
    %v1171 = vsel %vm226, %v1159, %v1128
    %v1172 = vsel %vm226, %v1160, %v1130
    %v1173 = vsel %vm226, %v1161, %v1132
    %v1174 = vsel %vm226, %v1162, %v1134
    %v1175 = vsel %vm226, %v1163, %v1136
    %v1176 = vsel %vm226, %v1164, %v1138
    %v1177 = vsel %vm226, %v1165, %v1140
    %v1178 = vsel %vm226, %v1166, %v1142
    %v1180 = vsel %vm226, %v952, 0
    %v1183 = vsel %vm226, %v953, 0
    %1185 = vmatprep.subr.mxu0 0.0
    %1186 = vmatpush1.msra.mxu0 %v1051
    %1187 = vmatprep.subr.mxu0 0.0
    %1188 = vmatpush1.msra.mxu0 %v1052
    %1189 = vmatprep.subr.mxu0 0.0
    %1190 = vmatpush1.msra.mxu0 %v1053
    %1191 = vmatprep.subr.mxu0 0.0
    %1192 = vmatpush1.msra.mxu0 %v1054
    %1193 = vmatprep.subr.mxu0 0.0
    %1194 = vmatpush1.msra.mxu0 %v1055
    %1195 = vmatprep.subr.mxu0 0.0
    %1196 = vmatpush1.msra.mxu0 %v1056
    %1197 = vmatprep.subr.mxu0 0.0
    %1198 = vmatpush1.msra.mxu0 %v1057
    %1199 = vmatprep.subr.mxu0 0.0
    %1200 = vmatpush1.msra.mxu0 %v1058
    %1201 = vmatprep.subr.mxu0 0.0
    %1202 = vmatpush1.msra.mxu0 0.0
    %1203 = vmatprep.subr.mxu0 0.0
    %1204 = vmatpush1.msra.mxu0 0.0
    %1205 = vmatprep.subr.mxu0 0.0
    %1206 = vmatpush1.msra.mxu0 0.0
    %1207 = vmatprep.subr.mxu0 0.0
    %1208 = vmatpush1.msra.mxu0 0.0
    %1209 = vmatprep.subr.mxu0 0.0
    %1210 = vmatpush1.msra.mxu0 0.0
    %1211 = vmatprep.subr.mxu0 0.0
    %1212 = vmatpush1.msra.mxu0 0.0
    %1213 = vmatprep.subr.mxu0 0.0
    %1214 = vmatpush1.msra.mxu0 0.0
    %1215 = vmatprep.subr.mxu0 0.0
    %1216 = vmatpush1.msra.mxu0 0.0
    %1217 = vmatprep.subr.mxu0 0.0
    %1218 = vmatpush1.msra.mxu0 0.0
    %1219 = vmatprep.subr.mxu0 0.0
    %1220 = vmatpush1.msra.mxu0 0.0
    %1221 = vmatprep.subr.mxu0 0.0
    %1222 = vmatpush1.msra.mxu0 0.0
    %1223 = vmatprep.subr.mxu0 0.0
    %1224 = vmatpush1.msra.mxu0 0.0
    %1225 = vmatprep.subr.mxu0 0.0
    %1226 = vmatpush1.msra.mxu0 0.0
    %1227 = vmatprep.subr.mxu0 0.0
    %1228 = vmatpush1.msra.mxu0 0.0
    %1229 = vmatprep.subr.mxu0 0.0
    %1230 = vmatpush1.msra.mxu0 0.0
    %1231 = vmatprep.subr.mxu0 0.0
    %1232 = vmatpush1.msra.mxu0 0.0
    %1233 = vmatprep.subr.mxu0 0.0
    %1234 = vmatpush1.msra.mxu0 0.0
    %1235 = vmatprep.subr.mxu0 0.0
    %1236 = vmatpush1.msra.mxu0 0.0
    %1237 = vmatprep.subr.mxu0 0.0
    %1238 = vmatpush1.msra.mxu0 0.0
    %1239 = vmatprep.subr.mxu0 0.0
    %1240 = vmatpush1.msra.mxu0 0.0
    %1241 = vmatprep.subr.mxu0 0.0
    %1242 = vmatpush1.msra.mxu0 0.0
    %1243 = vmatprep.subr.mxu0 0.0
    %1244 = vmatpush1.msra.mxu0 0.0
    %1245 = vmatprep.subr.mxu0 0.0
    %1246 = vmatpush1.msra.mxu0 0.0
    %1247 = vmatprep.subr.mxu0 0.0
    %1248 = vmatpush1.msra.mxu0 0.0
    %1249 = vmatprep.mubr.f32.mxu0 0.0
    %1250 = vmatmul.mubr.f32.gmra.mrb[0].mxu0 %v1180
    %v1251 = vpop.f32.mrb[0].mxu0
    %v1252 = vadd.f32 0.0, %v1251
    %v1253 = vpop.f32.mrb[0].mxu0
    %1254 = vmatprep.mubr.f32.mxu0 0.0
    %1255 = vmatmul.mubr.f32.gmra.mrb[0].mxu0 %v1183
    %v1256 = vpop.f32.mrb[0].mxu0
    %v1257 = vadd.f32 0.0, %v1256
    %v1258 = vpop.f32.mrb[0].mxu0
    %1259 = vdwg.mxu0
    %v1261 = vsel %vm118, %v974, 0
    %v1264 = vsel %vm118, %v975, 0
    %v1267 = vsel %vm118, %v976, 0
    %v1270 = vsel %vm118, %v977, 0
    %1272 = vmatprep.subr.mxu0 0.0
    %1273 = vmatpush1.msra.mxu0 %v1167
    %1274 = vmatprep.subr.mxu0 0.0
    %1275 = vmatpush1.msra.mxu0 %v1168
    %1276 = vmatprep.subr.mxu0 0.0
    %1277 = vmatpush1.msra.mxu0 %v1169
    %1278 = vmatprep.subr.mxu0 0.0
    %1279 = vmatpush1.msra.mxu0 %v1170
    %1280 = vmatprep.subr.mxu0 0.0
    %1281 = vmatpush1.msra.mxu0 %v1171
    %1282 = vmatprep.subr.mxu0 0.0
    %1283 = vmatpush1.msra.mxu0 %v1172
    %1284 = vmatprep.subr.mxu0 0.0
    %1285 = vmatpush1.msra.mxu0 %v1173
    %1286 = vmatprep.subr.mxu0 0.0
    %1287 = vmatpush1.msra.mxu0 %v1174
    %1288 = vmatprep.subr.mxu0 0.0
    %1289 = vmatpush1.msra.mxu0 %v1175
    %1290 = vmatprep.subr.mxu0 0.0
    %1291 = vmatpush1.msra.mxu0 %v1176
    %1292 = vmatprep.subr.mxu0 0.0
    %1293 = vmatpush1.msra.mxu0 %v1177
    %1294 = vmatprep.subr.mxu0 0.0
    %1295 = vmatpush1.msra.mxu0 %v1178
    %1296 = vmatprep.subr.mxu0 0.0
    %1297 = vmatpush1.msra.mxu0 0.0
    %1298 = vmatprep.subr.mxu0 0.0
    %1299 = vmatpush1.msra.mxu0 0.0
    %1300 = vmatprep.subr.mxu0 0.0
    %1301 = vmatpush1.msra.mxu0 0.0
    %1302 = vmatprep.subr.mxu0 0.0
    %1303 = vmatpush1.msra.mxu0 0.0
    %1304 = vmatprep.subr.mxu0 0.0
    %1305 = vmatpush1.msra.mxu0 0.0
    %1306 = vmatprep.subr.mxu0 0.0
    %1307 = vmatpush1.msra.mxu0 0.0
    %1308 = vmatprep.subr.mxu0 0.0
    %1309 = vmatpush1.msra.mxu0 0.0
    %1310 = vmatprep.subr.mxu0 0.0
    %1311 = vmatpush1.msra.mxu0 0.0
    %1312 = vmatprep.subr.mxu0 0.0
    %1313 = vmatpush1.msra.mxu0 0.0
    %1314 = vmatprep.subr.mxu0 0.0
    %1315 = vmatpush1.msra.mxu0 0.0
    %1316 = vmatprep.subr.mxu0 0.0
    %1317 = vmatpush1.msra.mxu0 0.0
    %1318 = vmatprep.subr.mxu0 0.0
    %1319 = vmatpush1.msra.mxu0 0.0
    %1320 = vmatprep.subr.mxu0 0.0
    %1321 = vmatpush1.msra.mxu0 0.0
    %1322 = vmatprep.subr.mxu0 0.0
    %1323 = vmatpush1.msra.mxu0 0.0
    %1324 = vmatprep.subr.mxu0 0.0
    %1325 = vmatpush1.msra.mxu0 0.0
    %1326 = vmatprep.subr.mxu0 0.0
    %1327 = vmatpush1.msra.mxu0 0.0
    %1328 = vmatprep.subr.mxu0 0.0
    %1329 = vmatpush1.msra.mxu0 0.0
    %1330 = vmatprep.subr.mxu0 0.0
    %1331 = vmatpush1.msra.mxu0 0.0
    %1332 = vmatprep.subr.mxu0 0.0
    %1333 = vmatpush1.msra.mxu0 0.0
    %1334 = vmatprep.subr.mxu0 0.0
    %1335 = vmatpush1.msra.mxu0 0.0
    %1336 = vmatprep.mubr.f32.mxu0 0.0
    %1337 = vmatmul.mubr.f32.gmra.mrb[0].mxu0 %v1261
    %v1338 = vpop.f32.mrb[0].mxu0
    %v1339 = vadd.f32 0.0, %v1338
    %v1340 = vpop.f32.mrb[0].mxu0
    %1341 = vmatprep.mubr.f32.mxu0 0.0
    %1342 = vmatmul.mubr.f32.gmra.mrb[0].mxu0 %v1264
    %v1343 = vpop.f32.mrb[0].mxu0
    %v1344 = vadd.f32 0.0, %v1343
    %v1345 = vpop.f32.mrb[0].mxu0
    %1346 = vmatprep.mubr.f32.mxu0 0.0
    %1347 = vmatmul.mubr.f32.gmra.mrb[0].mxu0 %v1267
    %v1348 = vpop.f32.mrb[0].mxu0
    %v1349 = vadd.f32 0.0, %v1348
    %v1350 = vpop.f32.mrb[0].mxu0
    %1351 = vmatprep.mubr.f32.mxu0 0.0
    %1352 = vmatmul.mubr.f32.gmra.mrb[0].mxu0 %v1270
    %v1353 = vpop.f32.mrb[0].mxu0
    %v1354 = vadd.f32 0.0, %v1353
    %v1355 = vpop.f32.mrb[0].mxu0
    %1356 = vdwg.mxu0
    %v1357 = vmul.f32 %v1252, %v1339
    %v1358 = vmul.f32 %v1257, %v1344
    %v1359 = vsel %vm1042, %v1357, 0.0
    %1360 = vadd.xlane.f32.xlu0 %v1359
    %v1361 = vpop.xlane.xlu0 %1360
    %v1362 = vsel %vm1042, %v1358, 0.0
    %1363 = vadd.xlane.f32.xlu0 %v1362
    %v1364 = vpop.xlane.xlu0 %1363
    %v1365 = vmul.f32 %v1252, %v1349
    %v1366 = vmul.f32 %v1257, %v1354
    %v1367 = vsel %vm1042, %v1365, 0.0
    %1368 = vadd.xlane.f32.xlu0 %v1367
    %v1369 = vpop.xlane.xlu0 %1368
    %v1370 = vsel %vm1042, %v1366, 0.0
    %1371 = vadd.xlane.f32.xlu0 %v1370
    %v1372 = vpop.xlane.xlu0 %1371
    %v1373 = vsub.f32 %v1369, %v1361
    %v1374 = vsub.f32 %v1372, %v1364
    %v1375 = vmax.f32 %v1373, 0.0
    %v1376 = vmax.f32 %v1374, 0.0
    %v1377 = vand.u32 2147483647, %v1373
    %v1378 = vand.u32 2147483647, %v1374
    %v1379 = vsub.f32 0.0, %v1377
    %v1380 = vsub.f32 0.0, %v1378
    %v1381 = vmul.f32 %v1379, 1.442695
    %v1382 = vpow.pop %v1381
    %v1383 = vmul.f32 %v1380, 1.442695
    %v1384 = vpow.pop %v1383
    %v1385 = vadd.f32 %v1382, 1.0
    %v1386 = vadd.f32 %v1384, 1.0
    %v1387 = vlog2.pop %v1385
    %v1388 = vmul.f32 %v1387, 0.6931472
    %v1389 = vlog2.pop %v1386
    %v1390 = vmul.f32 %v1389, 0.6931472
    %v1391 = vadd.f32 %v1375, %v1388
    %v1392 = vadd.f32 %v1376, %v1390
    %v1393 = vadd.f32 %v1391, %v1392
    %v1394 = vrot.slane %v1393, 4
    %v1395 = vadd.f32 %v1393, %v1394
    %v1396 = vrot.slane %v1395, 2
    %v1397 = vadd.f32 %v1395, %v1396
    %v1398 = vrot.slane %v1397, 1
    %v1399 = vadd.f32 %v1397, %v1398
    %v1400 = vrcp.pop 16.0
    %v1401 = vmul.f32 %v1399, %v1400
    %v1402 = vmul.f32 %v1252, %v1252
    %v1403 = vmul.f32 %v1257, %v1257
    %1406 = vrot.lane.b32.xlu0 %v1402, 96
    %v1407 = vpop.permute.xlu0 %1406
    %1408 = vrot.lane.b32.xlu0 %v1403, 96
    %v1409 = vpop.permute.xlu0 %1408
    %v1412 = vsel %vm1042, %v1407, 0.0
    %1413 = vadd.xlane.f32.xlu0 %v1412
    %v1414 = vpop.xlane.xlu0 %1413
    %v1415 = vsel %vm1042, %v1409, 0.0
    %1416 = vadd.xlane.f32.xlu0 %v1415
    %v1417 = vpop.xlane.xlu0 %1416
    %v1418 = vadd.f32 %v1414, %v1417
    %v1419 = vrot.slane %v1418, 4
    %v1420 = vadd.f32 %v1418, %v1419
    %v1421 = vrot.slane %v1420, 2
    %v1422 = vadd.f32 %v1420, %v1421
    %v1423 = vrot.slane %v1422, 1
    %v1424 = vadd.f32 %v1422, %v1423
    %v1425 = vmul.f32 %v1339, %v1339
    %v1426 = vmul.f32 %v1344, %v1344
    %1429 = vrot.lane.b32.xlu0 %v1425, 96
    %v1430 = vpop.permute.xlu0 %1429
    %1431 = vrot.lane.b32.xlu0 %v1426, 96
    %v1432 = vpop.permute.xlu0 %1431
    %v1435 = vsel %vm1042, %v1430, 0.0
    %1436 = vadd.xlane.f32.xlu0 %v1435
    %v1437 = vpop.xlane.xlu0 %1436
    %v1438 = vsel %vm1042, %v1432, 0.0
    %1439 = vadd.xlane.f32.xlu0 %v1438
    %v1440 = vpop.xlane.xlu0 %1439
    %v1441 = vadd.f32 %v1437, %v1440
    %v1442 = vrot.slane %v1441, 4
    %v1443 = vadd.f32 %v1441, %v1442
    %v1444 = vrot.slane %v1443, 2
    %v1445 = vadd.f32 %v1443, %v1444
    %v1446 = vrot.slane %v1445, 1
    %v1447 = vadd.f32 %v1445, %v1446
    %v1448 = vadd.f32 %v1424, %v1447
    %v1449 = vmul.f32 %v1349, %v1349
    %v1450 = vmul.f32 %v1354, %v1354
    %1453 = vrot.lane.b32.xlu0 %v1449, 96
    %v1454 = vpop.permute.xlu0 %1453
    %1455 = vrot.lane.b32.xlu0 %v1450, 96
    %v1456 = vpop.permute.xlu0 %1455
    %v1459 = vsel %vm1042, %v1454, 0.0
    %1460 = vadd.xlane.f32.xlu0 %v1459
    %v1461 = vpop.xlane.xlu0 %1460
    %v1462 = vsel %vm1042, %v1456, 0.0
    %1463 = vadd.xlane.f32.xlu0 %v1462
    %v1464 = vpop.xlane.xlu0 %1463
    %v1465 = vadd.f32 %v1461, %v1464
    %v1466 = vrot.slane %v1465, 4
    %v1467 = vadd.f32 %v1465, %v1466
    %v1468 = vrot.slane %v1467, 2
    %v1469 = vadd.f32 %v1467, %v1468
    %v1470 = vrot.slane %v1469, 1
    %v1471 = vadd.f32 %v1469, %v1470
    %v1472 = vadd.f32 %v1448, %v1471
    %v1473 = vmul.f32 %v1472, 3.125e-06
    %v1474 = vmul.f32 %v1252, 5.0
    %v1475 = vmul.f32 %v1257, 5.0
    %v1476 = vmul.f32 %v1339, 5.0
    %v1477 = vmul.f32 %v1344, 5.0
    %1480 = vrot.lane.b32.xlu0 %v1474, 64
    %v1481 = vpop.permute.xlu0 %1480
    %1482 = vrot.lane.b32.xlu0 %v1475, 64
    %v1483 = vpop.permute.xlu0 %1482
    %v1485 = vsel %vm1042, %v894, 0
    %v1488 = vsel %vm1042, %v895, 0
    %v1491 = vsel %vm1042, %v896, 0
    %v1494 = vsel %vm1042, %v897, 0
    %v1497 = vsel %vm1042, %v898, 0
    %v1500 = vsel %vm1042, %v899, 0
    %v1503 = vsel %vm1042, %v900, 0
    %v1506 = vsel %vm1042, %v901, 0
    %v1508 = vsel %vm1042, %v1481, 0
    %v1510 = vsel %vm1042, %v1483, 0
    %1512 = vmatprep.subr.mxu0 0.0
    %1513 = vmatpush1.xpose.msra.mxu0 %v1508
    %1514 = vmatprep.subr.mxu0 0.0
    %1515 = vmatpush1.xpose.msra.mxu0 %v1510
    %1516 = vmatprep.subr.mxu0 0.0
    %1517 = vmatpush1.xpose.msra.mxu0 0.0
    %1518 = vmatprep.subr.mxu0 0.0
    %1519 = vmatpush1.xpose.msra.mxu0 0.0
    %1520 = vmatprep.subr.mxu0 0.0
    %1521 = vmatpush1.xpose.msra.mxu0 0.0
    %1522 = vmatprep.subr.mxu0 0.0
    %1523 = vmatpush1.xpose.msra.mxu0 0.0
    %1524 = vmatprep.subr.mxu0 0.0
    %1525 = vmatpush1.xpose.msra.mxu0 0.0
    %1526 = vmatprep.subr.mxu0 0.0
    %1527 = vmatpush1.xpose.msra.mxu0 0.0
    %1528 = vmatprep.subr.mxu0 0.0
    %1529 = vmatpush1.xpose.msra.mxu0 0.0
    %1530 = vmatprep.subr.mxu0 0.0
    %1531 = vmatpush1.xpose.msra.mxu0 0.0
    %1532 = vmatprep.subr.mxu0 0.0
    %1533 = vmatpush1.xpose.msra.mxu0 0.0
    %1534 = vmatprep.subr.mxu0 0.0
    %1535 = vmatpush1.xpose.msra.mxu0 0.0
    %1536 = vmatprep.subr.mxu0 0.0
    %1537 = vmatpush1.xpose.msra.mxu0 0.0
    %1538 = vmatprep.subr.mxu0 0.0
    %1539 = vmatpush1.xpose.msra.mxu0 0.0
    %1540 = vmatprep.subr.mxu0 0.0
    %1541 = vmatpush1.xpose.msra.mxu0 0.0
    %1542 = vmatprep.subr.mxu0 0.0
    %1543 = vmatpush1.xpose.msra.mxu0 0.0
    %1544 = vmatprep.subr.mxu0 0.0
    %1545 = vmatpush1.xpose.msra.mxu0 0.0
    %1546 = vmatprep.subr.mxu0 0.0
    %1547 = vmatpush1.xpose.msra.mxu0 0.0
    %1548 = vmatprep.subr.mxu0 0.0
    %1549 = vmatpush1.xpose.msra.mxu0 0.0
    %1550 = vmatprep.subr.mxu0 0.0
    %1551 = vmatpush1.xpose.msra.mxu0 0.0
    %1552 = vmatprep.subr.mxu0 0.0
    %1553 = vmatpush1.xpose.msra.mxu0 0.0
    %1554 = vmatprep.subr.mxu0 0.0
    %1555 = vmatpush1.xpose.msra.mxu0 0.0
    %1556 = vmatprep.subr.mxu0 0.0
    %1557 = vmatpush1.xpose.msra.mxu0 0.0
    %1558 = vmatprep.subr.mxu0 0.0
    %1559 = vmatpush1.xpose.msra.mxu0 0.0
    %1560 = vmatprep.subr.mxu0 0.0
    %1561 = vmatpush1.xpose.msra.mxu0 0.0
    %1562 = vmatprep.subr.mxu0 0.0
    %1563 = vmatpush1.xpose.msra.mxu0 0.0
    %1564 = vmatprep.subr.mxu0 0.0
    %1565 = vmatpush1.xpose.msra.mxu0 0.0
    %1566 = vmatprep.subr.mxu0 0.0
    %1567 = vmatpush1.xpose.msra.mxu0 0.0
    %1568 = vmatprep.subr.mxu0 0.0
    %1569 = vmatpush1.xpose.msra.mxu0 0.0
    %1570 = vmatprep.subr.mxu0 0.0
    %1571 = vmatpush1.xpose.msra.mxu0 0.0
    %1572 = vmatprep.subr.mxu0 0.0
    %1573 = vmatpush1.xpose.msra.mxu0 0.0
    %1574 = vmatprep.subr.mxu0 0.0
    %1575 = vmatpush1.xpose.msra.mxu0 0.0
    %1576 = vmatprep.mubr.f32.mxu0 0.0
    %1577 = vmatmul.mubr.f32.gmra.mrb[0].mxu0 %v1485
    %v1578 = vpop.f32.mrb[0].mxu0
    %v1579 = vadd.f32 0.0, %v1578
    %v1580 = vpop.f32.mrb[0].mxu0
    %1581 = vmatprep.mubr.f32.mxu0 0.0
    %1582 = vmatmul.mubr.f32.gmra.mrb[0].mxu0 %v1488
    %v1583 = vpop.f32.mrb[0].mxu0
    %v1584 = vadd.f32 0.0, %v1583
    %v1585 = vpop.f32.mrb[0].mxu0
    %1586 = vmatprep.mubr.f32.mxu0 0.0
    %1587 = vmatmul.mubr.f32.gmra.mrb[0].mxu0 %v1491
    %v1588 = vpop.f32.mrb[0].mxu0
    %v1589 = vadd.f32 0.0, %v1588
    %v1590 = vpop.f32.mrb[0].mxu0
    %1591 = vmatprep.mubr.f32.mxu0 0.0
    %1592 = vmatmul.mubr.f32.gmra.mrb[0].mxu0 %v1494
    %v1593 = vpop.f32.mrb[0].mxu0
    %v1594 = vadd.f32 0.0, %v1593
    %v1595 = vpop.f32.mrb[0].mxu0
    %1596 = vmatprep.mubr.f32.mxu0 0.0
    %1597 = vmatmul.mubr.f32.gmra.mrb[0].mxu0 %v1497
    %v1598 = vpop.f32.mrb[0].mxu0
    %v1599 = vadd.f32 0.0, %v1598
    %v1600 = vpop.f32.mrb[0].mxu0
    %1601 = vmatprep.mubr.f32.mxu0 0.0
    %1602 = vmatmul.mubr.f32.gmra.mrb[0].mxu0 %v1500
    %v1603 = vpop.f32.mrb[0].mxu0
    %v1604 = vadd.f32 0.0, %v1603
    %v1605 = vpop.f32.mrb[0].mxu0
    %1606 = vmatprep.mubr.f32.mxu0 0.0
    %1607 = vmatmul.mubr.f32.gmra.mrb[0].mxu0 %v1503
    %v1608 = vpop.f32.mrb[0].mxu0
    %v1609 = vadd.f32 0.0, %v1608
    %v1610 = vpop.f32.mrb[0].mxu0
    %1611 = vmatprep.mubr.f32.mxu0 0.0
    %1612 = vmatmul.mubr.f32.gmra.mrb[0].mxu0 %v1506
    %v1613 = vpop.f32.mrb[0].mxu0
    %v1614 = vadd.f32 0.0, %v1613
    %v1615 = vpop.f32.mrb[0].mxu0
    %1616 = vdwg.mxu0
    %1619 = vrot.lane.b32.xlu0 %v1476, 64
    %v1620 = vpop.permute.xlu0 %1619
    %1621 = vrot.lane.b32.xlu0 %v1477, 64
    %v1622 = vpop.permute.xlu0 %1621
    %v1624 = vsel %vm1042, %v902, 0
    %v1627 = vsel %vm1042, %v903, 0
    %v1630 = vsel %vm1042, %v904, 0
    %v1633 = vsel %vm1042, %v905, 0
    %v1636 = vsel %vm1042, %v906, 0
    %v1639 = vsel %vm1042, %v907, 0
    %v1642 = vsel %vm1042, %v908, 0
    %v1645 = vsel %vm1042, %v909, 0
    %v1648 = vsel %vm1042, %v910, 0
    %v1651 = vsel %vm1042, %v911, 0
    %v1654 = vsel %vm1042, %v912, 0
    %v1657 = vsel %vm1042, %v913, 0
    %v1659 = vsel %vm1042, %v1620, 0
    %v1661 = vsel %vm1042, %v1622, 0
    %1663 = vmatprep.subr.mxu0 0.0
    %1664 = vmatpush1.xpose.msra.mxu0 %v1659
    %1665 = vmatprep.subr.mxu0 0.0
    %1666 = vmatpush1.xpose.msra.mxu0 %v1661
    %1667 = vmatprep.subr.mxu0 0.0
    %1668 = vmatpush1.xpose.msra.mxu0 0.0
    %1669 = vmatprep.subr.mxu0 0.0
    %1670 = vmatpush1.xpose.msra.mxu0 0.0
    %1671 = vmatprep.subr.mxu0 0.0
    %1672 = vmatpush1.xpose.msra.mxu0 0.0
    %1673 = vmatprep.subr.mxu0 0.0
    %1674 = vmatpush1.xpose.msra.mxu0 0.0
    %1675 = vmatprep.subr.mxu0 0.0
    %1676 = vmatpush1.xpose.msra.mxu0 0.0
    %1677 = vmatprep.subr.mxu0 0.0
    %1678 = vmatpush1.xpose.msra.mxu0 0.0
    %1679 = vmatprep.subr.mxu0 0.0
    %1680 = vmatpush1.xpose.msra.mxu0 0.0
    %1681 = vmatprep.subr.mxu0 0.0
    %1682 = vmatpush1.xpose.msra.mxu0 0.0
    %1683 = vmatprep.subr.mxu0 0.0
    %1684 = vmatpush1.xpose.msra.mxu0 0.0
    %1685 = vmatprep.subr.mxu0 0.0
    %1686 = vmatpush1.xpose.msra.mxu0 0.0
    %1687 = vmatprep.subr.mxu0 0.0
    %1688 = vmatpush1.xpose.msra.mxu0 0.0
    %1689 = vmatprep.subr.mxu0 0.0
    %1690 = vmatpush1.xpose.msra.mxu0 0.0
    %1691 = vmatprep.subr.mxu0 0.0
    %1692 = vmatpush1.xpose.msra.mxu0 0.0
    %1693 = vmatprep.subr.mxu0 0.0
    %1694 = vmatpush1.xpose.msra.mxu0 0.0
    %1695 = vmatprep.subr.mxu0 0.0
    %1696 = vmatpush1.xpose.msra.mxu0 0.0
    %1697 = vmatprep.subr.mxu0 0.0
    %1698 = vmatpush1.xpose.msra.mxu0 0.0
    %1699 = vmatprep.subr.mxu0 0.0
    %1700 = vmatpush1.xpose.msra.mxu0 0.0
    %1701 = vmatprep.subr.mxu0 0.0
    %1702 = vmatpush1.xpose.msra.mxu0 0.0
    %1703 = vmatprep.subr.mxu0 0.0
    %1704 = vmatpush1.xpose.msra.mxu0 0.0
    %1705 = vmatprep.subr.mxu0 0.0
    %1706 = vmatpush1.xpose.msra.mxu0 0.0
    %1707 = vmatprep.subr.mxu0 0.0
    %1708 = vmatpush1.xpose.msra.mxu0 0.0
    %1709 = vmatprep.subr.mxu0 0.0
    %1710 = vmatpush1.xpose.msra.mxu0 0.0
    %1711 = vmatprep.subr.mxu0 0.0
    %1712 = vmatpush1.xpose.msra.mxu0 0.0
    %1713 = vmatprep.subr.mxu0 0.0
    %1714 = vmatpush1.xpose.msra.mxu0 0.0
    %1715 = vmatprep.subr.mxu0 0.0
    %1716 = vmatpush1.xpose.msra.mxu0 0.0
    %1717 = vmatprep.subr.mxu0 0.0
    %1718 = vmatpush1.xpose.msra.mxu0 0.0
    %1719 = vmatprep.subr.mxu0 0.0
    %1720 = vmatpush1.xpose.msra.mxu0 0.0
    %1721 = vmatprep.subr.mxu0 0.0
    %1722 = vmatpush1.xpose.msra.mxu0 0.0
    %1723 = vmatprep.subr.mxu0 0.0
    %1724 = vmatpush1.xpose.msra.mxu0 0.0
    %1725 = vmatprep.subr.mxu0 0.0
    %1726 = vmatpush1.xpose.msra.mxu0 0.0
    %1727 = vmatprep.mubr.f32.mxu0 0.0
    %1728 = vmatmul.mubr.f32.gmra.mrb[0].mxu0 %v1624
    %v1729 = vpop.f32.mrb[0].mxu0
    %v1730 = vadd.f32 0.0, %v1729
    %v1731 = vpop.f32.mrb[0].mxu0
    %1732 = vmatprep.mubr.f32.mxu0 0.0
    %1733 = vmatmul.mubr.f32.gmra.mrb[0].mxu0 %v1627
    %v1734 = vpop.f32.mrb[0].mxu0
    %v1735 = vadd.f32 0.0, %v1734
    %v1736 = vpop.f32.mrb[0].mxu0
    %1737 = vmatprep.mubr.f32.mxu0 0.0
    %1738 = vmatmul.mubr.f32.gmra.mrb[0].mxu0 %v1630
    %v1739 = vpop.f32.mrb[0].mxu0
    %v1740 = vadd.f32 0.0, %v1739
    %v1741 = vpop.f32.mrb[0].mxu0
    %1742 = vmatprep.mubr.f32.mxu0 0.0
    %1743 = vmatmul.mubr.f32.gmra.mrb[0].mxu0 %v1633
    %v1744 = vpop.f32.mrb[0].mxu0
    %v1745 = vadd.f32 0.0, %v1744
    %v1746 = vpop.f32.mrb[0].mxu0
    %1747 = vmatprep.mubr.f32.mxu0 0.0
    %1748 = vmatmul.mubr.f32.gmra.mrb[0].mxu0 %v1636
    %v1749 = vpop.f32.mrb[0].mxu0
    %v1750 = vadd.f32 0.0, %v1749
    %v1751 = vpop.f32.mrb[0].mxu0
    %1752 = vmatprep.mubr.f32.mxu0 0.0
    %1753 = vmatmul.mubr.f32.gmra.mrb[0].mxu0 %v1639
    %v1754 = vpop.f32.mrb[0].mxu0
    %v1755 = vadd.f32 0.0, %v1754
    %v1756 = vpop.f32.mrb[0].mxu0
    %1757 = vmatprep.mubr.f32.mxu0 0.0
    %1758 = vmatmul.mubr.f32.gmra.mrb[0].mxu0 %v1642
    %v1759 = vpop.f32.mrb[0].mxu0
    %v1760 = vadd.f32 0.0, %v1759
    %v1761 = vpop.f32.mrb[0].mxu0
    %1762 = vmatprep.mubr.f32.mxu0 0.0
    %1763 = vmatmul.mubr.f32.gmra.mrb[0].mxu0 %v1645
    %v1764 = vpop.f32.mrb[0].mxu0
    %v1765 = vadd.f32 0.0, %v1764
    %v1766 = vpop.f32.mrb[0].mxu0
    %1767 = vmatprep.mubr.f32.mxu0 0.0
    %1768 = vmatmul.mubr.f32.gmra.mrb[0].mxu0 %v1648
    %v1769 = vpop.f32.mrb[0].mxu0
    %v1770 = vadd.f32 0.0, %v1769
    %v1771 = vpop.f32.mrb[0].mxu0
    %1772 = vmatprep.mubr.f32.mxu0 0.0
    %1773 = vmatmul.mubr.f32.gmra.mrb[0].mxu0 %v1651
    %v1774 = vpop.f32.mrb[0].mxu0
    %v1775 = vadd.f32 0.0, %v1774
    %v1776 = vpop.f32.mrb[0].mxu0
    %1777 = vmatprep.mubr.f32.mxu0 0.0
    %1778 = vmatmul.mubr.f32.gmra.mrb[0].mxu0 %v1654
    %v1779 = vpop.f32.mrb[0].mxu0
    %v1780 = vadd.f32 0.0, %v1779
    %v1781 = vpop.f32.mrb[0].mxu0
    %1782 = vmatprep.mubr.f32.mxu0 0.0
    %1783 = vmatmul.mubr.f32.gmra.mrb[0].mxu0 %v1657
    %v1784 = vpop.f32.mrb[0].mxu0
    %v1785 = vadd.f32 0.0, %v1784
    %v1786 = vpop.f32.mrb[0].mxu0
    %1787 = vdwg.mxu0
    %vm1788 = vcmask 130048
    %v1789 = vsel %vm1788, %v1579, -inf
    %v1790 = vsel %vm1788, %v1584, -inf
    %v1791 = vsel %vm1788, %v1589, -inf
    %v1792 = vsel %vm1788, %v1594, -inf
    %v1793 = vsel %vm1788, %v1599, -inf
    %v1794 = vmax.f32 %v1789, %v1793
    %v1795 = vsel %vm1788, %v1604, -inf
    %v1796 = vmax.f32 %v1790, %v1795
    %v1797 = vsel %vm1788, %v1609, -inf
    %v1798 = vmax.f32 %v1791, %v1797
    %v1799 = vsel %vm1788, %v1614, -inf
    %v1800 = vmax.f32 %v1792, %v1799
    %v1801 = vmax.f32 %v1794, %v1796
    %v1802 = vmax.f32 %v1798, %v1800
    %v1803 = vmax.f32 %v1801, %v1802
    %v1804 = vrot.slane %v1803, 4
    %v1805 = vmax.f32 %v1803, %v1804
    %v1806 = vrot.slane %v1805, 2
    %v1807 = vmax.f32 %v1805, %v1806
    %v1808 = vrot.slane %v1807, 1
    %v1809 = vmax.f32 %v1807, %v1808
    %v1810 = vsel %vm1788, %v1730, -inf
    %v1811 = vsel %vm1788, %v1735, -inf
    %v1812 = vsel %vm1788, %v1740, -inf
    %v1813 = vsel %vm1788, %v1745, -inf
    %v1814 = vsel %vm1788, %v1750, -inf
    %v1815 = vmax.f32 %v1810, %v1814
    %v1816 = vsel %vm1788, %v1755, -inf
    %v1817 = vmax.f32 %v1811, %v1816
    %v1818 = vsel %vm1788, %v1760, -inf
    %v1819 = vmax.f32 %v1812, %v1818
    %v1820 = vsel %vm1788, %v1765, -inf
    %v1821 = vmax.f32 %v1813, %v1820
    %v1822 = vsel %vm1788, %v1770, -inf
    %v1823 = vmax.f32 %v1815, %v1822
    %v1824 = vsel %vm1788, %v1775, -inf
    %v1825 = vmax.f32 %v1817, %v1824
    %v1826 = vsel %vm1788, %v1780, -inf
    %v1827 = vmax.f32 %v1819, %v1826
    %v1828 = vsel %vm1788, %v1785, -inf
    %v1829 = vmax.f32 %v1821, %v1828
    %v1830 = vmax.f32 %v1823, %v1825
    %v1831 = vmax.f32 %v1827, %v1829
    %v1832 = vmax.f32 %v1830, %v1831
    %v1833 = vrot.slane %v1832, 4
    %v1834 = vmax.f32 %v1832, %v1833
    %v1835 = vrot.slane %v1834, 2
    %v1836 = vmax.f32 %v1834, %v1835
    %v1837 = vrot.slane %v1836, 1
    %v1838 = vmax.f32 %v1836, %v1837
    %v1839 = vsub.f32 %v1579, %v1809
    %v1840 = vsub.f32 %v1584, %v1809
    %v1841 = vsub.f32 %v1589, %v1809
    %v1842 = vsub.f32 %v1594, %v1809
    %v1843 = vsub.f32 %v1599, %v1809
    %v1844 = vsub.f32 %v1604, %v1809
    %v1845 = vsub.f32 %v1609, %v1809
    %v1846 = vsub.f32 %v1614, %v1809
    %v1847 = vmul.f32 %v1839, 1.442695
    %v1848 = vpow.pop %v1847
    %v1849 = vmul.f32 %v1840, 1.442695
    %v1850 = vpow.pop %v1849
    %v1851 = vmul.f32 %v1841, 1.442695
    %v1852 = vpow.pop %v1851
    %v1853 = vmul.f32 %v1842, 1.442695
    %v1854 = vpow.pop %v1853
    %v1855 = vmul.f32 %v1843, 1.442695
    %v1856 = vpow.pop %v1855
    %v1857 = vmul.f32 %v1844, 1.442695
    %v1858 = vpow.pop %v1857
    %v1859 = vmul.f32 %v1845, 1.442695
    %v1860 = vpow.pop %v1859
    %v1861 = vmul.f32 %v1846, 1.442695
    %v1862 = vpow.pop %v1861
    %v1863 = vsel %vm1788, %v1848, 0.0
    %v1864 = vsel %vm1788, %v1850, 0.0
    %v1865 = vadd.f32 %v1863, %v1864
    %v1866 = vsel %vm1788, %v1852, 0.0
    %v1867 = vadd.f32 %v1865, %v1866
    %v1868 = vsel %vm1788, %v1854, 0.0
    %v1869 = vadd.f32 %v1867, %v1868
    %v1870 = vsel %vm1788, %v1856, 0.0
    %v1871 = vadd.f32 %v1869, %v1870
    %v1872 = vsel %vm1788, %v1858, 0.0
    %v1873 = vadd.f32 %v1871, %v1872
    %v1874 = vsel %vm1788, %v1860, 0.0
    %v1875 = vadd.f32 %v1873, %v1874
    %v1876 = vsel %vm1788, %v1862, 0.0
    %v1877 = vadd.f32 %v1875, %v1876
    %v1878 = vrot.slane %v1877, 4
    %v1879 = vadd.f32 %v1877, %v1878
    %v1880 = vrot.slane %v1879, 2
    %v1881 = vadd.f32 %v1879, %v1880
    %v1882 = vrot.slane %v1881, 1
    %v1883 = vadd.f32 %v1881, %v1882
    %v1884 = vadd.f32 %v1883, 1e-08
    %v1885 = vlog2.pop %v1884
    %v1886 = vmul.f32 %v1885, 0.6931472
    %v1887 = vadd.f32 %v1809, %v1886
    %v1888 = vsub.f32 %v1730, %v1838
    %v1889 = vsub.f32 %v1735, %v1838
    %v1890 = vsub.f32 %v1740, %v1838
    %v1891 = vsub.f32 %v1745, %v1838
    %v1892 = vsub.f32 %v1750, %v1838
    %v1893 = vsub.f32 %v1755, %v1838
    %v1894 = vsub.f32 %v1760, %v1838
    %v1895 = vsub.f32 %v1765, %v1838
    %v1896 = vsub.f32 %v1770, %v1838
    %v1897 = vsub.f32 %v1775, %v1838
    %v1898 = vsub.f32 %v1780, %v1838
    %v1899 = vsub.f32 %v1785, %v1838
    %v1900 = vmul.f32 %v1888, 1.442695
    %v1901 = vpow.pop %v1900
    %v1902 = vmul.f32 %v1889, 1.442695
    %v1903 = vpow.pop %v1902
    %v1904 = vmul.f32 %v1890, 1.442695
    %v1905 = vpow.pop %v1904
    %v1906 = vmul.f32 %v1891, 1.442695
    %v1907 = vpow.pop %v1906
    %v1908 = vmul.f32 %v1892, 1.442695
    %v1909 = vpow.pop %v1908
    %v1910 = vmul.f32 %v1893, 1.442695
    %v1911 = vpow.pop %v1910
    %v1912 = vmul.f32 %v1894, 1.442695
    %v1913 = vpow.pop %v1912
    %v1914 = vmul.f32 %v1895, 1.442695
    %v1915 = vpow.pop %v1914
    %v1916 = vmul.f32 %v1896, 1.442695
    %v1917 = vpow.pop %v1916
    %v1918 = vmul.f32 %v1897, 1.442695
    %v1919 = vpow.pop %v1918
    %v1920 = vmul.f32 %v1898, 1.442695
    %v1921 = vpow.pop %v1920
    %v1922 = vmul.f32 %v1899, 1.442695
    %v1923 = vpow.pop %v1922
    %v1924 = vsel %vm1788, %v1901, 0.0
    %v1925 = vsel %vm1788, %v1903, 0.0
    %v1926 = vadd.f32 %v1924, %v1925
    %v1927 = vsel %vm1788, %v1905, 0.0
    %v1928 = vadd.f32 %v1926, %v1927
    %v1929 = vsel %vm1788, %v1907, 0.0
    %v1930 = vadd.f32 %v1928, %v1929
    %v1931 = vsel %vm1788, %v1909, 0.0
    %v1932 = vadd.f32 %v1930, %v1931
    %v1933 = vsel %vm1788, %v1911, 0.0
    %v1934 = vadd.f32 %v1932, %v1933
    %v1935 = vsel %vm1788, %v1913, 0.0
    %v1936 = vadd.f32 %v1934, %v1935
    %v1937 = vsel %vm1788, %v1915, 0.0
    %v1938 = vadd.f32 %v1936, %v1937
    %v1939 = vsel %vm1788, %v1917, 0.0
    %v1940 = vadd.f32 %v1938, %v1939
    %v1941 = vsel %vm1788, %v1919, 0.0
    %v1942 = vadd.f32 %v1940, %v1941
    %v1943 = vsel %vm1788, %v1921, 0.0
    %v1944 = vadd.f32 %v1942, %v1943
    %v1945 = vsel %vm1788, %v1923, 0.0
    %v1946 = vadd.f32 %v1944, %v1945
    %v1947 = vrot.slane %v1946, 4
    %v1948 = vadd.f32 %v1946, %v1947
    %v1949 = vrot.slane %v1948, 2
    %v1950 = vadd.f32 %v1948, %v1949
    %v1951 = vrot.slane %v1950, 1
    %v1952 = vadd.f32 %v1950, %v1951
    %v1953 = vadd.f32 %v1952, 1e-08
    %v1954 = vlog2.pop %v1953
    %v1955 = vmul.f32 %v1954, 0.6931472
    %v1956 = vadd.f32 %v1838, %v1955
    %v1957 = vsel %vm1788, %v1887, 0.0
    %1958 = vadd.xlane.f32.xlu0 %v1957
    %v1959 = vpop.xlane.xlu0 %1958
    %v1960 = vmul.f32 %v1959, %v1400
    %v1961 = vsel %vm1788, %v1956, 0.0
    %1962 = vadd.xlane.f32.xlu0 %v1961
    %v1963 = vpop.xlane.xlu0 %1962
    %v1964 = vmul.f32 %v1963, %v1400
    %v1965 = vadd.f32 %v1960, %v1964
    %v1968 = vmul.f32 %v1252, %v1481
    %v1969 = vmul.f32 %v1257, %v1483
    %v1970 = vsel %vm1042, %v1968, 0.0
    %1971 = vadd.xlane.f32.xlu0 %v1970
    %v1972 = vpop.xlane.xlu0 %1971
    %v1973 = vsel %vm1042, %v1969, 0.0
    %1974 = vadd.xlane.f32.xlu0 %v1973
    %v1975 = vpop.xlane.xlu0 %1974
    %v1976 = vmax.f32 %v1972, -5.0
    %v1977 = vmax.f32 %v1975, -5.0
    %v1978 = vmin.f32 %v1976, 5.0
    %v1979 = vmin.f32 %v1977, 5.0
    %v1982 = vmul.f32 %v1339, %v1620
    %v1983 = vmul.f32 %v1344, %v1622
    %v1984 = vsel %vm1042, %v1982, 0.0
    %1985 = vadd.xlane.f32.xlu0 %v1984
    %v1986 = vpop.xlane.xlu0 %1985
    %v1987 = vsel %vm1042, %v1983, 0.0
    %1988 = vadd.xlane.f32.xlu0 %v1987
    %v1989 = vpop.xlane.xlu0 %1988
    %v1990 = vmax.f32 %v1986, -5.0
    %v1991 = vmax.f32 %v1989, -5.0
    %v1992 = vmin.f32 %v1990, 5.0
    %v1993 = vmin.f32 %v1991, 5.0
    %v1994 = vadd.f32 %v1978, %v1979
    %v1995 = vrot.slane %v1994, 4
    %v1996 = vadd.f32 %v1994, %v1995
    %v1997 = vrot.slane %v1996, 2
    %v1998 = vadd.f32 %v1996, %v1997
    %v1999 = vrot.slane %v1998, 1
    %v2000 = vadd.f32 %v1998, %v1999
    %v2001 = vmul.f32 %v2000, %v1400
    %v2002 = vadd.f32 %v1992, %v1993
    %v2003 = vrot.slane %v2002, 4
    %v2004 = vadd.f32 %v2002, %v2003
    %v2005 = vrot.slane %v2004, 2
    %v2006 = vadd.f32 %v2004, %v2005
    %v2007 = vrot.slane %v2006, 1
    %v2008 = vadd.f32 %v2006, %v2007
    %v2009 = vmul.f32 %v2008, %v1400
    %v2010 = vadd.f32 %v2001, %v2009
    %v2011 = vsub.f32 %v1965, %v2010
    %v2012 = vmul.f32 %v2011, 0.1
    %vm2013 = vcmp.eq.s32.totalorder %v941, 0
    %vm2014 = vcmp.eq.s32.totalorder %v941, 1
    %vm2015 = vcmp.eq.s32.totalorder %v941, 2
    %v2016 = vsel %vm2015, %v2012, 0.0
    %v2017 = vsel %vm2014, %v1473, %v2016
    %v2018 = vsel %vm2013, %v1401, %v2017
    %2019 = vst [vmem:[#allocation2] sm:$0x1] %v2018
    // Predicated region
    $region30: #{tpu_custom_call.1} parent=1 // pred_check
      _
    $region31: #{tpu_custom_call.1} parent=1 // pred_check_branch
      %2021 = sbr.rel (0) target = $region33
    $region32: #{tpu_custom_call.1} parent=1 // pred_region
      %s2023 = ssub.s32 16, 16
      %2024 = vsyncadd [#allocation3], %s2023
      %s2026 = sshll.u32 [#allocation2], 4
      %s2027 = int_to_ptr.vmem [resolvable:$true] %s2026
      %2029 = dma.vmem_to_hbm [thread:$0]  %s2027, 16, %s7, [#allocation3]
    $region33: #{tpu_custom_call.1} parent=1 // pred_fallthru
      _
    // Predicated region
    $region34: #{tpu_custom_call.1} parent=1 // pred_check
      _
    $region35: #{tpu_custom_call.1} parent=1 // pred_check_branch
      %2031 = sbr.rel (0) target = $region37
    $region36: #{tpu_custom_call.1} parent=1 // pred_region
      %2032 = dma.done [#allocation3], 16
    $region37: #{tpu_custom_call.1} parent=1 // pred_fallthru
      _
    %2033 = vsyncpa [#allocation3], 1

</llo_original>
